<compile_context>
chip_gen: v7x
topology: tpu7x:2x2x1
jax: 0.10.0
libtpu: 0.0.40
codegen_flags: <defaults>
</compile_context>

<pallas_src>
import functools

import jax
import jax.numpy as jnp
from jax import lax
from jax.experimental import pallas as pl
from jax.experimental.pallas import tpu as pltpu

NEG_INF = -1e30
LEAKY_SLOPE = 0.01      # F.leaky_relu default negative_slope
BN_EPS = 1e-5


# ----------------------------------------------------------------------------
# Fused per-graph kernel: embedding + L GAT layers (+ residual) + readout.
# One grid step == one graph of the batch.
# ----------------------------------------------------------------------------
def gat_net_kernel(h0_ref, adjb_ref, snorm_ref, w_emb_t_ref, w_fc_t_ref,
                   a_cat_ref, scale_rep_ref, shift_ref, rep_mat_ref,
                   seg_ones_ref, tile_cols_ref, rep_nodes_ref,
                   w_out_ref, b_ref, o_ref):
    """Shapes (all f32, VMEM resident; N nodes, D hidden, H heads, L layers):
      h0        (1, N, Fin)   node features of this graph
      adjb      (1, N, N)     additive mask: 0 on edge src->dst, NEG_INF else
      snorm     (1, N, 1)     graph_norm factor per node
      w_emb_t   (Fin, D)      embedding_lin weight, transposed
      w_fc_t    (L, D, D)     per-layer GAT fc weight (heads stacked), transposed
      a_cat     (L, D, 2H)    block-diag attn weights, cols [0:H]=src, [H:2H]=dst
      scale_rep (L, H*N, D)   eval-BN scale, head-masked, rows repeated per node
      shift     (L, 1, D)     eval-BN shift (heads concatenated)
      rep_mat   (H, H*N)      rep_mat[h, h*N+j] = 1      (head -> column broadcast)
      seg_ones  (H*N, H)      rep_mat^T                  (per-head segment sum)
      tile_cols (N, H*N)      tile_cols[j', h*N+j] = (j==j')
      rep_nodes (H*N, N)      tile_cols^T                (node tiling for values)
      w_out     (D, 1)        fused readout weight  w_ro^T @ w_p^T
      b         (1, 1)        predict bias
      o         (1, 1, 1)     graph-level prediction (output)
    """
    f32 = jnp.float32
    num_layers = w_fc_t_ref.shape[0]
    num_heads = rep_mat_ref.shape[0]

    snorm = snorm_ref[0]                                     # (N, 1)
    rep_mat = rep_mat_ref[...]                               # (H, H*N)
    seg_ones = seg_ones_ref[...]                             # (H*N, H)
    tile_cols = tile_cols_ref[...]                           # (N, H*N)
    rep_nodes = rep_nodes_ref[...]                           # (H*N, N)

    # Additive adjacency bias tiled to head-major columns, once per graph
    # (layer-invariant):  adj_tile[i, h*N + j] = adjb[i, j].
    adj_tile = jnp.dot(adjb_ref[0], tile_cols, preferred_element_type=f32)

    # embedding_lin (no bias); in_feat_dropout is identity in eval mode.
    h = jnp.dot(h0_ref[0], w_emb_t_ref[...], preferred_element_type=f32)

    def layer_body(l, h):
        h_in = h
        # Per-head fc for all heads in one lane-dense matmul: (N, D).
        z = jnp.dot(h, w_fc_t_ref[l], preferred_element_type=f32)
        # Both attention projections in ONE matmul: (N, 2H).
        e = jnp.dot(z, a_cat_ref[l], preferred_element_type=f32)
        e_src = e[:, :num_heads]                             # (N, H)
        e_dst = e[:, num_heads:]                             # (N, H)
        # dst logits broadcast to head-major columns: s_dst[i, h*N+j] = e_dst[i, h]
        s_dst = jnp.dot(e_dst, rep_mat, preferred_element_type=f32)   # (N, H*N)
        # src logits as one row, no transpose/reshape: s_src[0, h*N+j] = e_src[j, h]
        s_src = jnp.sum(jnp.dot(e_src, rep_mat, preferred_element_type=f32)
                        * tile_cols, axis=0, keepdims=True)            # (1, H*N)

        scores = s_dst + s_src                                          # (N, H*N)
        scores = jnp.where(scores >= 0.0, scores, LEAKY_SLOPE * scores)  # leaky_relu
        scores = scores + adj_tile                                       # additive mask

        # Softmax per (dst, head) segment over src nodes.  A per-row global
        # max shift is uniform within every segment (exact softmax) and keeps
        # exponents <= 0; denominator guarded against full underflow.
        m = jnp.max(scores, axis=-1, keepdims=True)
        p = jnp.exp(scores - m)                                          # (N, H*N)
        denom = jnp.dot(p, seg_ones, preferred_element_type=f32)         # (N, H)
        inv = pl.reciprocal(jnp.maximum(denom, 1e-30), approx=True)
        alpha = p * jnp.dot(inv, rep_mat, preferred_element_type=f32)    # (N, H*N)

        # Values: zh[h*N+j, :] = z[j, :] * (eval-BN scale, head-masked).
        zh = jnp.dot(rep_nodes, z, preferred_element_type=f32) * scale_rep_ref[l]
        # ONE aggregation matmul for all heads (head concat folded into mask).
        h_new = jnp.dot(alpha, zh, preferred_element_type=f32)           # (N, D)

        # graph_norm, eval-BN shift, ELU (exp only on clamped-negative part).
        h_new = h_new * snorm + shift_ref[l]
        neg = jnp.minimum(h_new, 0.0)
        h_new = jnp.where(h_new > 0.0, h_new, jnp.exp(neg) - 1.0)
        # dropout after ELU is identity in eval mode.
        return h_new + h_in                                              # residual

    h = lax.fori_loop(0, num_layers, layer_body, h)

    # linear_ro + sum readout + linear_predict collapsed (both linear):
    #   out = (sum_n h_n) @ (w_ro^T w_p^T) + b
    hg = jnp.sum(h, axis=0, keepdims=True)                               # (1, D)
    o_ref[0] = jnp.dot(hg, w_out_ref[...], preferred_element_type=f32) + b_ref[...]


# ----------------------------------------------------------------------------
# Host-side weight preprocessing + batched pallas_call wrapper.
# ----------------------------------------------------------------------------
def _block_diag(vecs):
    """(H, dh) per-head vectors -> block-diagonal (H*dh, H) matrix."""
    num_heads, dh = vecs.shape
    eye = jnp.eye(num_heads, dtype=jnp.float32)
    return (vecs.astype(jnp.float32)[:, :, None] * eye[:, None, :]
            ).reshape(num_heads * dh, num_heads)


def gat_net_forward(params, h0, adj, snorm_n, *, num_heads):
    """Batched GATNet forward.

    h0:      (B, N, Fin) node features
    adj:     (B, N, N)   dense adjacency (>0 on edge src->dst), with self-loops
    snorm_n: (B, N, 1)   graph_norm factor
    Returns  (B, 1)      graph-level regression outputs.
    """
    h0 = h0.astype(jnp.float32)
    snorm_n = snorm_n.astype(jnp.float32)
    B, N, _ = h0.shape
    D = params["w_emb"].shape[0]
    H = num_heads
    dh = D // H

    # Additive adjacency bias (0 on edges, NEG_INF elsewhere).
    adj_bias = jnp.where(adj > 0, 0.0, NEG_INF).astype(jnp.float32)

    # head_mask[h, c] = 1 if column c belongs to head h.
    head_mask = jnp.repeat(jnp.eye(H, dtype=jnp.float32), dh, axis=1)     # (H, D)

    w_fc_t, a_cat, scale_rep, shift = [], [], [], []
    for layer in params["layers"]:
        w_fc_t.append(jnp.transpose(layer["w_fc"]).astype(jnp.float32))
        a_src_bd = _block_diag(layer["attn"][:, :dh])                      # (D, H)
        a_dst_bd = _block_diag(layer["attn"][:, dh:])                      # (D, H)
        a_cat.append(jnp.concatenate([a_src_bd, a_dst_bd], axis=1))        # (D, 2H)
        scale = layer["bn_gamma"] / jnp.sqrt(layer["bn_var"] + BN_EPS)     # (H, dh)
        shf = layer["bn_beta"] - layer["bn_mean"] * scale                  # (H, dh)
        scale_full = scale.reshape(1, D) * head_mask                       # (H, D)
        scale_rep.append(jnp.repeat(scale_full, N, axis=0))                # (H*N, D)
        shift.append(shf.reshape(1, D))                                    # (1, D)

    w_fc_t = jnp.stack(w_fc_t)             # (L, D, D)
    a_cat = jnp.stack(a_cat)               # (L, D, 2H)
    scale_rep = jnp.stack(scale_rep)       # (L, H*N, D)
    shift = jnp.stack(shift)               # (L, 1, D)

    w_emb_t = jnp.transpose(params["w_emb"]).astype(jnp.float32)           # (Fin, D)
    # Fused readout weight: sum is linear, so fold linear_ro and linear_predict.
    w_out = (jnp.transpose(params["w_ro"]) @
             jnp.transpose(params["w_p"])).astype(jnp.float32)             # (D, 1)
    b_p = params["b_p"].reshape(1, 1).astype(jnp.float32)

    # Host-precomputed 0/1 broadcast/tiling constants: the kernel builds all
    # lane-dense layouts with MXU matmuls instead of XLU transposes/repeats.
    eye_h = jnp.eye(H, dtype=jnp.float32)
    eye_n = jnp.eye(N, dtype=jnp.float32)
    rep_mat = jnp.repeat(eye_h, N, axis=1)        # (H, H*N)
    seg_ones = jnp.transpose(rep_mat)             # (H*N, H)
    tile_cols = jnp.tile(eye_n, (1, H))           # (N, H*N)
    rep_nodes = jnp.transpose(tile_cols)          # (H*N, N)

    def graph_spec(shape):                        # per-graph batched input
        nd = len(shape)
        return pl.BlockSpec((1,) + tuple(shape[1:]),
                            lambda b, nd=nd: (b,) + (0,) * (nd - 1))

    def weight_spec(shape):                       # VMEM-resident across grid
        nd = len(shape)
        return pl.BlockSpec(tuple(shape), lambda b, nd=nd: (0,) * nd)

    inputs = (h0, adj_bias, snorm_n, w_emb_t, w_fc_t, a_cat, scale_rep,
              shift, rep_mat, seg_ones, tile_cols, rep_nodes, w_out, b_p)
    in_specs = ([graph_spec(h0.shape), graph_spec(adj_bias.shape),
                 graph_spec(snorm_n.shape)]
                + [weight_spec(x.shape) for x in inputs[3:]])

    out = pl.pallas_call(
        gat_net_kernel,
        out_shape=jax.ShapeDtypeStruct((B, 1, 1), jnp.float32),
        grid=(B,),
        in_specs=in_specs,
        out_specs=pl.BlockSpec((1, 1, 1), lambda b: (b, 0, 0)),
        compiler_params=pltpu.CompilerParams(
            dimension_semantics=("parallel",)),
    )(*inputs)
    return out.reshape(B, 1)


# ----------------------------------------------------------------------------
# Deterministic parameter init (PyTorch default U(-1/sqrt(fan_in), 1/sqrt(fan_in))).
# ----------------------------------------------------------------------------
def init_params(key, num_atom_type, hidden_dim, out_dim, num_heads, n_layers):
    dh = hidden_dim // num_heads

    def lin_init(k, fan_out, fan_in):
        bound = 1.0 / jnp.sqrt(fan_in)
        return jax.random.uniform(k, (fan_out, fan_in), jnp.float32, -bound, bound)

    keys = jax.random.split(key, 3 + 2 * n_layers)
    params = {
        "w_emb": lin_init(keys[0], hidden_dim, num_atom_type),
        "w_ro": lin_init(keys[1], out_dim, hidden_dim),
        "w_p": lin_init(keys[2], 1, out_dim),
        "b_p": jnp.zeros((1,), jnp.float32),
        "layers": [],
    }
    for l in range(n_layers):
        k_fc, k_at = keys[3 + 2 * l], keys[4 + 2 * l]
        params["layers"].append({
            # per-head fc weights stacked: rows [k*dh:(k+1)*dh] belong to head k
            "w_fc": lin_init(k_fc, hidden_dim, hidden_dim),
            # per-head attn_fc weight, shape (H, 2*dh) = [a_src | a_dst]
            "attn": jax.random.uniform(k_at, (num_heads, 2 * dh), jnp.float32,
                                       -1.0 / jnp.sqrt(2 * dh),
                                       1.0 / jnp.sqrt(2 * dh)),
            # BatchNorm1d(dh) per head, PyTorch defaults (eval mode)
            "bn_gamma": jnp.ones((num_heads, dh), jnp.float32),
            "bn_beta": jnp.zeros((num_heads, dh), jnp.float32),
            "bn_mean": jnp.zeros((num_heads, dh), jnp.float32),
            "bn_var": jnp.ones((num_heads, dh), jnp.float32),
        })
    return params


if __name__ == "__main__":
    # Small synthetic batch of graphs consistent with the module's forward.
    BATCH = 4
    N_NODES = 16
    NUM_ATOM_TYPE = 28
    HIDDEN = 32
    OUT_DIM = 32
    N_HEADS = 4
    N_LAYERS = 2

    root = jax.random.PRNGKey(0)
    k_h, k_adj, k_par = jax.random.split(root, 3)

    h0 = jax.random.normal(k_h, (BATCH, N_NODES, NUM_ATOM_TYPE), jnp.float32)
    adj = (jax.random.uniform(k_adj, (BATCH, N_NODES, N_NODES)) < 0.3
           ).astype(jnp.float32)
    adj = jnp.maximum(adj, jnp.eye(N_NODES, dtype=jnp.float32)[None])  # self-loops
    snorm_n = jnp.full((BATCH, N_NODES, 1), 1.0 / jnp.sqrt(N_NODES), jnp.float32)

    params = init_params(k_par, NUM_ATOM_TYPE, HIDDEN, OUT_DIM, N_HEADS, N_LAYERS)

    fwd = jax.jit(functools.partial(gat_net_forward, num_heads=N_HEADS))
    out = fwd(params, h0, adj, snorm_n)
    jax.block_until_ready(out)
    assert out.shape == (BATCH, 1) and out.dtype == jnp.float32
    assert bool(jnp.all(jnp.isfinite(out)))
    print("KERNEL_OK")
</pallas_src>

<mosaic_0001>
module attributes {stable_mosaic.version = 11 : i64} {
  func.func @gat_net_kernel(%arg0: i32, %arg1: memref<1x16x28xf32, #tpu.memory_space<vmem>>, %arg2: memref<1x16x16xf32, #tpu.memory_space<vmem>>, %arg3: memref<1x16x1xf32, #tpu.memory_space<vmem>>, %arg4: memref<28x32xf32, #tpu.memory_space<vmem>>, %arg5: memref<2x32x32xf32, #tpu.memory_space<vmem>>, %arg6: memref<2x32x8xf32, #tpu.memory_space<vmem>>, %arg7: memref<2x64x32xf32, #tpu.memory_space<vmem>>, %arg8: memref<2x1x32xf32, #tpu.memory_space<vmem>>, %arg9: memref<4x64xf32, #tpu.memory_space<vmem>>, %arg10: memref<64x4xf32, #tpu.memory_space<vmem>>, %arg11: memref<16x64xf32, #tpu.memory_space<vmem>>, %arg12: memref<64x16xf32, #tpu.memory_space<vmem>>, %arg13: memref<32x1xf32, #tpu.memory_space<vmem>>, %arg14: memref<1x1xf32, #tpu.memory_space<vmem>>, %arg15: memref<1x1x1xf32, #tpu.memory_space<vmem>>) attributes {dimension_semantics = [#tpu.dimension_semantics<parallel>], iteration_bounds = array<i64: 4>, scalar_prefetch = 0 : i64, scratch_operands = 0 : i64, tpu.core_type = #tpu.core_type<tc>, window_params = [{transform_indices = @transform_0, window_bounds = array<i64: 1, 16, 28>}, {transform_indices = @transform_1, window_bounds = array<i64: 1, 16, 16>}, {transform_indices = @transform_2, window_bounds = array<i64: 1, 16, 1>}, {pipeline_mode = #tpu.pipeline_mode<synchronous>, transform_indices = @transform_3, window_bounds = array<i64: 28, 32>}, {pipeline_mode = #tpu.pipeline_mode<synchronous>, transform_indices = @transform_4, window_bounds = array<i64: 2, 32, 32>}, {pipeline_mode = #tpu.pipeline_mode<synchronous>, transform_indices = @transform_5, window_bounds = array<i64: 2, 32, 8>}, {pipeline_mode = #tpu.pipeline_mode<synchronous>, transform_indices = @transform_6, window_bounds = array<i64: 2, 64, 32>}, {pipeline_mode = #tpu.pipeline_mode<synchronous>, transform_indices = @transform_7, window_bounds = array<i64: 2, 1, 32>}, {pipeline_mode = #tpu.pipeline_mode<synchronous>, transform_indices = @transform_8, window_bounds = array<i64: 4, 64>}, {pipeline_mode = #tpu.pipeline_mode<synchronous>, transform_indices = @transform_9, window_bounds = array<i64: 64, 4>}, {pipeline_mode = #tpu.pipeline_mode<synchronous>, transform_indices = @transform_10, window_bounds = array<i64: 16, 64>}, {pipeline_mode = #tpu.pipeline_mode<synchronous>, transform_indices = @transform_11, window_bounds = array<i64: 64, 16>}, {pipeline_mode = #tpu.pipeline_mode<synchronous>, transform_indices = @transform_12, window_bounds = array<i64: 32, 1>}, {pipeline_mode = #tpu.pipeline_mode<synchronous>, transform_indices = @transform_13, window_bounds = array<i64: 1, 1>}, {transform_indices = @transform_14, window_bounds = array<i64: 1, 1, 1>}]} {
    %c0 = arith.constant 0 : index
    %c0_0 = arith.constant 0 : index
    %c0_1 = arith.constant 0 : index
    %0 = vector.load %arg3[%c0, %c0_0, %c0_1] : memref<1x16x1xf32, #tpu.memory_space<vmem>>, vector<1x16x1xf32>
    %1 = vector.shape_cast %0 : vector<1x16x1xf32> to vector<16x1xf32>
    %c0_2 = arith.constant 0 : index
    %c0_3 = arith.constant 0 : index
    %2 = vector.load %arg9[%c0_2, %c0_3] : memref<4x64xf32, #tpu.memory_space<vmem>>, vector<4x64xf32>
    %c0_4 = arith.constant 0 : index
    %c0_5 = arith.constant 0 : index
    %3 = vector.load %arg10[%c0_4, %c0_5] : memref<64x4xf32, #tpu.memory_space<vmem>>, vector<64x4xf32>
    %c0_6 = arith.constant 0 : index
    %c0_7 = arith.constant 0 : index
    %4 = vector.load %arg11[%c0_6, %c0_7] : memref<16x64xf32, #tpu.memory_space<vmem>>, vector<16x64xf32>
    %c0_8 = arith.constant 0 : index
    %c0_9 = arith.constant 0 : index
    %5 = vector.load %arg12[%c0_8, %c0_9] : memref<64x16xf32, #tpu.memory_space<vmem>>, vector<64x16xf32>
    %c0_10 = arith.constant 0 : index
    %c0_11 = arith.constant 0 : index
    %c0_12 = arith.constant 0 : index
    %6 = vector.load %arg2[%c0_10, %c0_11, %c0_12] : memref<1x16x16xf32, #tpu.memory_space<vmem>>, vector<1x16x16xf32>
    %7 = vector.shape_cast %6 : vector<1x16x16xf32> to vector<16x16xf32>
    %cst = arith.constant dense<0.000000e+00> : vector<16x64xf32>
    %8 = tpu.matmul %7, %4, %cst {dimension_numbers = #tpu.dot_dimension_numbers<[1], [0], [0], [1], [0, 0, 1, 1], [], []>} : vector<16x16xf32>, vector<16x64xf32>, vector<16x64xf32> -> vector<16x64xf32>
    %c0_13 = arith.constant 0 : index
    %c0_14 = arith.constant 0 : index
    %c0_15 = arith.constant 0 : index
    %9 = vector.load %arg1[%c0_13, %c0_14, %c0_15] : memref<1x16x28xf32, #tpu.memory_space<vmem>>, vector<1x16x28xf32>
    %10 = vector.shape_cast %9 : vector<1x16x28xf32> to vector<16x28xf32>
    %c0_16 = arith.constant 0 : index
    %c0_17 = arith.constant 0 : index
    %11 = vector.load %arg4[%c0_16, %c0_17] : memref<28x32xf32, #tpu.memory_space<vmem>>, vector<28x32xf32>
    %cst_18 = arith.constant dense<0.000000e+00> : vector<16x32xf32>
    %12 = tpu.matmul %10, %11, %cst_18 {dimension_numbers = #tpu.dot_dimension_numbers<[1], [0], [0], [1], [0, 0, 1, 1], [], []>} : vector<16x28xf32>, vector<28x32xf32>, vector<16x32xf32> -> vector<16x32xf32>
    %c0_i32 = arith.constant 0 : i32
    %c2_i32 = arith.constant 2 : i32
    %13 = arith.addi %c0_i32, %c2_i32 : i32
    %c1_i32 = arith.constant 1 : i32
    %14 = scf.for %arg16 = %c0_i32 to %13 step %c1_i32 iter_args(%arg17 = %12) -> (vector<16x32xf32>)  : i32 {
      %24 = arith.index_cast %arg16 : i32 to index
      %c0_29 = arith.constant 0 : index
      %c0_30 = arith.constant 0 : index
      %25 = vector.load %arg5[%24, %c0_29, %c0_30] : memref<2x32x32xf32, #tpu.memory_space<vmem>>, vector<1x32x32xf32>
      %26 = vector.shape_cast %25 : vector<1x32x32xf32> to vector<32x32xf32>
      %cst_31 = arith.constant dense<0.000000e+00> : vector<16x32xf32>
      %27 = tpu.matmul %arg17, %26, %cst_31 {dimension_numbers = #tpu.dot_dimension_numbers<[1], [0], [0], [1], [0, 0, 1, 1], [], []>} : vector<16x32xf32>, vector<32x32xf32>, vector<16x32xf32> -> vector<16x32xf32>
      %28 = arith.index_cast %arg16 : i32 to index
      %c0_32 = arith.constant 0 : index
      %c0_33 = arith.constant 0 : index
      %29 = vector.load %arg6[%28, %c0_32, %c0_33] : memref<2x32x8xf32, #tpu.memory_space<vmem>>, vector<1x32x8xf32>
      %30 = vector.shape_cast %29 : vector<1x32x8xf32> to vector<32x8xf32>
      %cst_34 = arith.constant dense<0.000000e+00> : vector<16x8xf32>
      %31 = tpu.matmul %27, %30, %cst_34 {dimension_numbers = #tpu.dot_dimension_numbers<[1], [0], [0], [1], [0, 0, 1, 1], [], []>} : vector<16x32xf32>, vector<32x8xf32>, vector<16x8xf32> -> vector<16x8xf32>
      %32 = vector.extract_strided_slice %31 {offsets = [0, 0], sizes = [16, 4], strides = [1, 1]} : vector<16x8xf32> to vector<16x4xf32>
      %33 = vector.extract_strided_slice %31 {offsets = [0, 4], sizes = [16, 4], strides = [1, 1]} : vector<16x8xf32> to vector<16x4xf32>
      %cst_35 = arith.constant dense<0.000000e+00> : vector<16x64xf32>
      %34 = tpu.matmul %33, %2, %cst_35 {dimension_numbers = #tpu.dot_dimension_numbers<[1], [0], [0], [1], [0, 0, 1, 1], [], []>} : vector<16x4xf32>, vector<4x64xf32>, vector<16x64xf32> -> vector<16x64xf32>
      %cst_36 = arith.constant dense<0.000000e+00> : vector<16x64xf32>
      %35 = tpu.matmul %32, %2, %cst_36 {dimension_numbers = #tpu.dot_dimension_numbers<[1], [0], [0], [1], [0, 0, 1, 1], [], []>} : vector<16x4xf32>, vector<4x64xf32>, vector<16x64xf32> -> vector<16x64xf32>
      %36 = arith.mulf %35, %4 : vector<16x64xf32>
      %cst_37 = arith.constant dense<0.000000e+00> : vector<64xf32>
      %37 = vector.multi_reduction <add>, %36, %cst_37 [0] : vector<16x64xf32> to vector<64xf32>
      %38 = vector.shape_cast %37 : vector<64xf32> to vector<1x64xf32>
      %39 = vector.broadcast %38 : vector<1x64xf32> to vector<16x64xf32>
      %40 = arith.addf %34, %39 : vector<16x64xf32>
      %cst_38 = arith.constant 0.000000e+00 : f32
      %41 = vector.broadcast %cst_38 : f32 to vector<16x64xf32>
      %42 = arith.cmpf oge, %40, %41 : vector<16x64xf32>
      %cst_39 = arith.constant 0.00999999977 : f32
      %43 = vector.broadcast %cst_39 : f32 to vector<16x64xf32>
      %44 = arith.mulf %43, %40 : vector<16x64xf32>
      %45 = arith.select %42, %40, %44 : vector<16x64xi1>, vector<16x64xf32>
      %46 = arith.addf %45, %8 : vector<16x64xf32>
      %cst_40 = arith.constant dense<0xFF800000> : vector<16xf32>
      %47 = vector.multi_reduction <maximumf>, %46, %cst_40 [1] : vector<16x64xf32> to vector<16xf32>
      %48 = vector.shape_cast %47 : vector<16xf32> to vector<16x1xf32>
      %49 = vector.broadcast %48 : vector<16x1xf32> to vector<16x64xf32>
      %50 = arith.subf %46, %49 : vector<16x64xf32>
      %51 = math.exp %50 : vector<16x64xf32>
      %cst_41 = arith.constant dense<0.000000e+00> : vector<16x4xf32>
      %52 = tpu.matmul %51, %3, %cst_41 {dimension_numbers = #tpu.dot_dimension_numbers<[1], [0], [0], [1], [0, 0, 1, 1], [], []>} : vector<16x64xf32>, vector<64x4xf32>, vector<16x4xf32> -> vector<16x4xf32>
      %cst_42 = arith.constant 1.000000e-30 : f32
      %53 = vector.broadcast %cst_42 : f32 to vector<16x4xf32>
      %54 = arith.maximumf %52, %53 : vector<16x4xf32>
      %55 = tpu.reciprocal %54 {approx = true} : vector<16x4xf32> -> vector<16x4xf32>
      %cst_43 = arith.constant dense<0.000000e+00> : vector<16x64xf32>
      %56 = tpu.matmul %55, %2, %cst_43 {dimension_numbers = #tpu.dot_dimension_numbers<[1], [0], [0], [1], [0, 0, 1, 1], [], []>} : vector<16x4xf32>, vector<4x64xf32>, vector<16x64xf32> -> vector<16x64xf32>
      %57 = arith.mulf %51, %56 : vector<16x64xf32>
      %cst_44 = arith.constant dense<0.000000e+00> : vector<64x32xf32>
      %58 = tpu.matmul %5, %27, %cst_44 {dimension_numbers = #tpu.dot_dimension_numbers<[1], [0], [0], [1], [0, 0, 1, 1], [], []>} : vector<64x16xf32>, vector<16x32xf32>, vector<64x32xf32> -> vector<64x32xf32>
      %59 = arith.index_cast %arg16 : i32 to index
      %c0_45 = arith.constant 0 : index
      %c0_46 = arith.constant 0 : index
      %60 = vector.load %arg7[%59, %c0_45, %c0_46] : memref<2x64x32xf32, #tpu.memory_space<vmem>>, vector<1x64x32xf32>
      %61 = vector.shape_cast %60 : vector<1x64x32xf32> to vector<64x32xf32>
      %62 = arith.mulf %58, %61 : vector<64x32xf32>
      %cst_47 = arith.constant dense<0.000000e+00> : vector<16x32xf32>
      %63 = tpu.matmul %57, %62, %cst_47 {dimension_numbers = #tpu.dot_dimension_numbers<[1], [0], [0], [1], [0, 0, 1, 1], [], []>} : vector<16x64xf32>, vector<64x32xf32>, vector<16x32xf32> -> vector<16x32xf32>
      %64 = vector.broadcast %1 : vector<16x1xf32> to vector<16x32xf32>
      %65 = arith.mulf %63, %64 : vector<16x32xf32>
      %66 = arith.index_cast %arg16 : i32 to index
      %c0_48 = arith.constant 0 : index
      %c0_49 = arith.constant 0 : index
      %67 = vector.load %arg8[%66, %c0_48, %c0_49] : memref<2x1x32xf32, #tpu.memory_space<vmem>>, vector<1x1x32xf32>
      %68 = vector.shape_cast %67 : vector<1x1x32xf32> to vector<1x32xf32>
      %69 = vector.broadcast %68 : vector<1x32xf32> to vector<16x32xf32>
      %70 = arith.addf %65, %69 : vector<16x32xf32>
      %cst_50 = arith.constant 0.000000e+00 : f32
      %71 = vector.broadcast %cst_50 : f32 to vector<16x32xf32>
      %72 = arith.minimumf %70, %71 : vector<16x32xf32>
      %cst_51 = arith.constant 0.000000e+00 : f32
      %73 = vector.broadcast %cst_51 : f32 to vector<16x32xf32>
      %74 = arith.cmpf ogt, %70, %73 : vector<16x32xf32>
      %75 = math.exp %72 : vector<16x32xf32>
      %cst_52 = arith.constant 1.000000e+00 : f32
      %76 = vector.broadcast %cst_52 : f32 to vector<16x32xf32>
      %77 = arith.subf %75, %76 : vector<16x32xf32>
      %78 = arith.select %74, %70, %77 : vector<16x32xi1>, vector<16x32xf32>
      %79 = arith.addf %78, %arg17 : vector<16x32xf32>
      scf.yield %79 : vector<16x32xf32>
    }
    %c2_i32_19 = arith.constant 2 : i32
    %cst_20 = arith.constant dense<0.000000e+00> : vector<32xf32>
    %15 = vector.multi_reduction <add>, %14, %cst_20 [0] : vector<16x32xf32> to vector<32xf32>
    %16 = vector.shape_cast %15 : vector<32xf32> to vector<1x32xf32>
    %c0_21 = arith.constant 0 : index
    %c0_22 = arith.constant 0 : index
    %17 = vector.load %arg13[%c0_21, %c0_22] : memref<32x1xf32, #tpu.memory_space<vmem>>, vector<32x1xf32>
    %cst_23 = arith.constant dense<0.000000e+00> : vector<1x1xf32>
    %18 = tpu.matmul %16, %17, %cst_23 {dimension_numbers = #tpu.dot_dimension_numbers<[1], [0], [0], [1], [0, 0, 1, 1], [], []>} : vector<1x32xf32>, vector<32x1xf32>, vector<1x1xf32> -> vector<1x1xf32>
    %c0_24 = arith.constant 0 : index
    %c0_25 = arith.constant 0 : index
    %19 = vector.load %arg14[%c0_24, %c0_25] : memref<1x1xf32, #tpu.memory_space<vmem>>, vector<1x1xf32>
    %20 = arith.addf %18, %19 : vector<1x1xf32>
    %c0_26 = arith.constant 0 : index
    %c0_27 = arith.constant 0 : index
    %c0_28 = arith.constant 0 : index
    %21 = vector.load %arg15[%c0_26, %c0_27, %c0_28] : memref<1x1x1xf32, #tpu.memory_space<vmem>>, vector<1x1x1xf32>
    %22 = vector.shape_cast %21 : vector<1x1x1xf32> to vector<1x1xf32>
    %23 = vector.shape_cast %20 : vector<1x1xf32> to vector<1x1x1xf32>
    tpu.vector_store %arg15[%c0_26, %c0_27, %c0_28], %23 {strides = array<i32>} : memref<1x1x1xf32, #tpu.memory_space<vmem>>, vector<1x1x1xf32>,
    return
  }
  func.func @transform_0(%arg0: i32) -> (i32, i32, i32) {
    %c0_i32 = arith.constant 0 : i32
    %c0_i32_0 = arith.constant 0 : i32
    %c0_i32_1 = arith.constant 0 : i32
    return %arg0, %c0_i32, %c0_i32_0 : i32, i32, i32
  }
  func.func @transform_1(%arg0: i32) -> (i32, i32, i32) {
    %c0_i32 = arith.constant 0 : i32
    %c0_i32_0 = arith.constant 0 : i32
    %c0_i32_1 = arith.constant 0 : i32
    return %arg0, %c0_i32, %c0_i32_0 : i32, i32, i32
  }
  func.func @transform_2(%arg0: i32) -> (i32, i32, i32) {
    %c0_i32 = arith.constant 0 : i32
    %c0_i32_0 = arith.constant 0 : i32
    %c0_i32_1 = arith.constant 0 : i32
    return %arg0, %c0_i32, %c0_i32_0 : i32, i32, i32
  }
  func.func @transform_3(%arg0: i32) -> (i32, i32) {
    %c0_i32 = arith.constant 0 : i32
    %c0_i32_0 = arith.constant 0 : i32
    %c0_i32_1 = arith.constant 0 : i32
    return %c0_i32, %c0_i32_0 : i32, i32
  }
  func.func @transform_4(%arg0: i32) -> (i32, i32, i32) {
    %c0_i32 = arith.constant 0 : i32
    %c0_i32_0 = arith.constant 0 : i32
    %c0_i32_1 = arith.constant 0 : i32
    %c0_i32_2 = arith.constant 0 : i32
    return %c0_i32, %c0_i32_0, %c0_i32_1 : i32, i32, i32
  }
  func.func @transform_5(%arg0: i32) -> (i32, i32, i32) {
    %c0_i32 = arith.constant 0 : i32
    %c0_i32_0 = arith.constant 0 : i32
    %c0_i32_1 = arith.constant 0 : i32
    %c0_i32_2 = arith.constant 0 : i32
    return %c0_i32, %c0_i32_0, %c0_i32_1 : i32, i32, i32
  }
  func.func @transform_6(%arg0: i32) -> (i32, i32, i32) {
    %c0_i32 = arith.constant 0 : i32
    %c0_i32_0 = arith.constant 0 : i32
    %c0_i32_1 = arith.constant 0 : i32
    %c0_i32_2 = arith.constant 0 : i32
    return %c0_i32, %c0_i32_0, %c0_i32_1 : i32, i32, i32
  }
  func.func @transform_7(%arg0: i32) -> (i32, i32, i32) {
    %c0_i32 = arith.constant 0 : i32
    %c0_i32_0 = arith.constant 0 : i32
    %c0_i32_1 = arith.constant 0 : i32
    %c0_i32_2 = arith.constant 0 : i32
    return %c0_i32, %c0_i32_0, %c0_i32_1 : i32, i32, i32
  }
  func.func @transform_8(%arg0: i32) -> (i32, i32) {
    %c0_i32 = arith.constant 0 : i32
    %c0_i32_0 = arith.constant 0 : i32
    %c0_i32_1 = arith.constant 0 : i32
    return %c0_i32, %c0_i32_0 : i32, i32
  }
  func.func @transform_9(%arg0: i32) -> (i32, i32) {
    %c0_i32 = arith.constant 0 : i32
    %c0_i32_0 = arith.constant 0 : i32
    %c0_i32_1 = arith.constant 0 : i32
    return %c0_i32, %c0_i32_0 : i32, i32
  }
  func.func @transform_10(%arg0: i32) -> (i32, i32) {
    %c0_i32 = arith.constant 0 : i32
    %c0_i32_0 = arith.constant 0 : i32
    %c0_i32_1 = arith.constant 0 : i32
    return %c0_i32, %c0_i32_0 : i32, i32
  }
  func.func @transform_11(%arg0: i32) -> (i32, i32) {
    %c0_i32 = arith.constant 0 : i32
    %c0_i32_0 = arith.constant 0 : i32
    %c0_i32_1 = arith.constant 0 : i32
    return %c0_i32, %c0_i32_0 : i32, i32
  }
  func.func @transform_12(%arg0: i32) -> (i32, i32) {
    %c0_i32 = arith.constant 0 : i32
    %c0_i32_0 = arith.constant 0 : i32
    %c0_i32_1 = arith.constant 0 : i32
    return %c0_i32, %c0_i32_0 : i32, i32
  }
  func.func @transform_13(%arg0: i32) -> (i32, i32) {
    %c0_i32 = arith.constant 0 : i32
    %c0_i32_0 = arith.constant 0 : i32
    %c0_i32_1 = arith.constant 0 : i32
    return %c0_i32, %c0_i32_0 : i32, i32
  }
  func.func @transform_14(%arg0: i32) -> (i32, i32, i32) {
    %c0_i32 = arith.constant 0 : i32
    %c0_i32_0 = arith.constant 0 : i32
    %c0_i32_1 = arith.constant 0 : i32
    return %arg0, %c0_i32, %c0_i32_0 : i32, i32, i32
  }
}

</mosaic_0001>

<llo_original>
// kernel: gat_net_forward.1
$region0: #{gat_net_forward.1}
  #allocation0 [shape = 'u32[]', space=smem, size = 0x4, offset = 0x4, fixed_abs, tag = 'smem constant byte address 0x4 - core index']
  #allocation1 [shape = 'u32[144,128]{1,0:T(1,128)}', space=vmem, size = 0x12000, scoped, tag = 'internal scratch']
  #allocation2 [shape = 'f32[1,1]{1,0:T(1,128)S(1)}', space=vmem, size = 0x200, scoped, tag = 'scoped memory for gat_net_forward.1']
  %s0 = inlined_call_operand.vmem [shape: f32[4,16,28], index: 0, kind: input, shape index: {}]
  %s1 = inlined_call_operand.vmem [shape: f32[4,16,16], index: 1, kind: input, shape index: {}]
  %s2 = inlined_call_operand.vmem [shape: f32[4,16,1], index: 2, kind: input, shape index: {}]
  %s3 = inlined_call_operand.vmem [shape: f32[28,32], index: 3, kind: input, shape index: {}]
  %s4 = inlined_call_operand.vmem [shape: f32[2,32,32], index: 4, kind: input, shape index: {}]
  %s5 = inlined_call_operand.vmem [shape: f32[2,32,8], index: 5, kind: input, shape index: {}]
  %s6 = inlined_call_operand.vmem [shape: f32[2,64,32], index: 6, kind: input, shape index: {}]
  %s7 = inlined_call_operand.vmem [shape: f32[2,1,32], index: 7, kind: input, shape index: {}]
  %s8 = inlined_call_operand.vmem [shape: f32[4,64], index: 8, kind: input, shape index: {}]
  %s9 = inlined_call_operand.vmem [shape: f32[64,4], index: 9, kind: input, shape index: {}]
  %s10 = inlined_call_operand.vmem [shape: f32[16,64], index: 10, kind: input, shape index: {}]
  %s11 = inlined_call_operand.vmem [shape: f32[64,16], index: 11, kind: input, shape index: {}]
  %s12 = inlined_call_operand.vmem [shape: f32[32,1], index: 12, kind: input, shape index: {}]
  %s13 = inlined_call_operand.<no memory space> [shape: f32[1,1], index: 13, kind: input, shape index: {}]
  %s14 = inlined_call_operand.vmem [shape: f32[4,1,1], index: 14, kind: output, shape index: {}]
  %s15 = sld [smem:[#allocation0]]
  $region96: #{gat_net_forward.1} parent=0
    _
  %s17 = ssub.s32 1, %s15
  %s18 = scalar_select 0, %s17, %s15
  %v19 = vstv %s13
  %20 = vst [vmem:[#allocation2] sm:$0x1] %v19
  loop: start=0, step=1, limit=6
  $region2: #{gat_net_forward.1} parent=0 // loop_pre_header
    _
  $region3: #{gat_net_forward.1} parent=0 // loop_header
    %s22 = sphi 0, %s26
    %p23 = scmp.ge.s32.totalorder %s22, 6
    %s32 = sphi 0, %s34
    %s35 = sphi 0, %s32
    %s36 = sphi 0, %s35
    %s52 = sphi 0, %s36
    %s58 = sphi 0, %s60
    %s61 = sphi 0, %s58
    %s62 = sphi 0, %s61
    %s78 = sphi 0, %s62
    %s84 = sphi 0, %s86
    %s87 = sphi 0, %s84
    %s88 = sphi 0, %s87
    %s104 = sphi 0, %s88
    %s108 = sphi 0, %s108
    %s110 = sphi 0, %s108
    %s111 = sphi 0, %s110
    %s125 = sphi 0, %s111
    %s129 = sphi 0, %s129
    %s131 = sphi 0, %s129
    %s132 = sphi 0, %s131
    %s146 = sphi 0, %s132
    %s150 = sphi 0, %s150
    %s152 = sphi 0, %s150
    %s153 = sphi 0, %s152
    %s167 = sphi 0, %s153
    %s171 = sphi 0, %s171
    %s173 = sphi 0, %s171
    %s174 = sphi 0, %s173
    %s188 = sphi 0, %s174
    %s192 = sphi 0, %s192
    %s194 = sphi 0, %s192
    %s195 = sphi 0, %s194
    %s209 = sphi 0, %s195
    %s213 = sphi 0, %s213
    %s215 = sphi 0, %s213
    %s216 = sphi 0, %s215
    %s230 = sphi 0, %s216
    %s234 = sphi 0, %s234
    %s236 = sphi 0, %s234
    %s237 = sphi 0, %s236
    %s251 = sphi 0, %s237
    %s255 = sphi 0, %s255
    %s257 = sphi 0, %s255
    %s258 = sphi 0, %s257
    %s272 = sphi 0, %s258
    %s276 = sphi 0, %s276
    %s278 = sphi 0, %s276
    %s279 = sphi 0, %s278
    %s293 = sphi 0, %s279
    %s297 = sphi 0, %s297
    %s299 = sphi 0, %s297
    %s300 = sphi 0, %s299
    %s314 = sphi 0, %s300
    %s318 = sphi 0, %s318
    %s320 = sphi 0, %s318
    %s321 = sphi 0, %s320
    %s335 = sphi 0, %s321
    %s341 = sphi 0, %s343
    %s344 = sphi 0, %s341
    %s345 = sphi 0, %s344
    %s361 = sphi 0, %s345
  $region4: #{gat_net_forward.1} parent=0 // loop_header_branch
    %25 = sbr.rel (%p23) target = $region8
  $region5: #{gat_net_forward.1} parent=0 // loop_body
    %s27 = ssub.s32 %s22, 1
    %s28 = ssub.s32 %s22, 2
    %s29 = sadd.s32 %s22, 1
    %s30 = ssub.s32 %s22, %s29
    %p31 = scmp.eq.s32.totalorder %s30, 0
    %s33 = sadd.s32 %s32, 1
    %s34 = scalar_select %p31, %s32, %s33
    %p37 = pneg %p31
    %p38 = scmp.eq.s32.totalorder %s22, 3
    %p39 = por %p37, %p38
    %p40 = scmp.ne.s32.totalorder %s32, %s35
    %p41 = scmp.eq.s32.totalorder %s22, 0
    %p42 = por %p40, %p41
    %p43 = scmp.ne.s32.totalorder %s32, %s35
    %p44 = scmp.eq.s32.totalorder %s27, 3
    %p45 = por %p43, %p44
    %p46 = scmp.ne.s32.totalorder %s35, %s36
    %p47 = scmp.eq.s32.totalorder %s27, 0
    %p48 = por %p46, %p47
    %p49 = scmp.ne.s32.totalorder %s35, %s36
    %p50 = scmp.eq.s32.totalorder %s28, 3
    %p51 = por %p49, %p50
    %p53 = scmp.ne.s32.totalorder %s36, %s52
    %p54 = scmp.eq.s32.totalorder %s28, 0
    %p55 = por %p53, %p54
    %s56 = ssub.s32 %s22, %s29
    %p57 = scmp.eq.s32.totalorder %s56, 0
    %s59 = sadd.s32 %s58, 1
    %s60 = scalar_select %p57, %s58, %s59
    %p63 = pneg %p57
    %p64 = scmp.eq.s32.totalorder %s22, 3
    %p65 = por %p63, %p64
    %p66 = scmp.ne.s32.totalorder %s58, %s61
    %p67 = scmp.eq.s32.totalorder %s22, 0
    %p68 = por %p66, %p67
    %p69 = scmp.ne.s32.totalorder %s58, %s61
    %p70 = scmp.eq.s32.totalorder %s27, 3
    %p71 = por %p69, %p70
    %p72 = scmp.ne.s32.totalorder %s61, %s62
    %p73 = scmp.eq.s32.totalorder %s27, 0
    %p74 = por %p72, %p73
    %p75 = scmp.ne.s32.totalorder %s61, %s62
    %p76 = scmp.eq.s32.totalorder %s28, 3
    %p77 = por %p75, %p76
    %p79 = scmp.ne.s32.totalorder %s62, %s78
    %p80 = scmp.eq.s32.totalorder %s28, 0
    %p81 = por %p79, %p80
    %s82 = ssub.s32 %s22, %s29
    %p83 = scmp.eq.s32.totalorder %s82, 0
    %s85 = sadd.s32 %s84, 1
    %s86 = scalar_select %p83, %s84, %s85
    %p89 = pneg %p83
    %p90 = scmp.eq.s32.totalorder %s22, 3
    %p91 = por %p89, %p90
    %p92 = scmp.ne.s32.totalorder %s84, %s87
    %p93 = scmp.eq.s32.totalorder %s22, 0
    %p94 = por %p92, %p93
    %p95 = scmp.ne.s32.totalorder %s84, %s87
    %p96 = scmp.eq.s32.totalorder %s27, 3
    %p97 = por %p95, %p96
    %p98 = scmp.ne.s32.totalorder %s87, %s88
    %p99 = scmp.eq.s32.totalorder %s27, 0
    %p100 = por %p98, %p99
    %p101 = scmp.ne.s32.totalorder %s87, %s88
    %p102 = scmp.eq.s32.totalorder %s28, 3
    %p103 = por %p101, %p102
    %p105 = scmp.ne.s32.totalorder %s88, %s104
    %p106 = scmp.eq.s32.totalorder %s28, 0
    %p107 = por %p105, %p106
    %s109 = sadd.s32 %s108, 1
    %p112 = scmp.eq.s32.totalorder %s22, 3
    %p113 = scmp.ne.s32.totalorder %s108, %s110
    %p114 = scmp.eq.s32.totalorder %s22, 0
    %p115 = por %p113, %p114
    %p116 = scmp.ne.s32.totalorder %s108, %s110
    %p117 = scmp.eq.s32.totalorder %s27, 3
    %p118 = por %p116, %p117
    %p119 = scmp.ne.s32.totalorder %s110, %s111
    %p120 = scmp.eq.s32.totalorder %s27, 0
    %p121 = por %p119, %p120
    %p122 = scmp.ne.s32.totalorder %s110, %s111
    %p123 = scmp.eq.s32.totalorder %s28, 3
    %p124 = por %p122, %p123
    %p126 = scmp.ne.s32.totalorder %s111, %s125
    %p127 = scmp.eq.s32.totalorder %s28, 0
    %p128 = por %p126, %p127
    %s130 = sadd.s32 %s129, 1
    %p133 = scmp.eq.s32.totalorder %s22, 3
    %p134 = scmp.ne.s32.totalorder %s129, %s131
    %p135 = scmp.eq.s32.totalorder %s22, 0
    %p136 = por %p134, %p135
    %p137 = scmp.ne.s32.totalorder %s129, %s131
    %p138 = scmp.eq.s32.totalorder %s27, 3
    %p139 = por %p137, %p138
    %p140 = scmp.ne.s32.totalorder %s131, %s132
    %p141 = scmp.eq.s32.totalorder %s27, 0
    %p142 = por %p140, %p141
    %p143 = scmp.ne.s32.totalorder %s131, %s132
    %p144 = scmp.eq.s32.totalorder %s28, 3
    %p145 = por %p143, %p144
    %p147 = scmp.ne.s32.totalorder %s132, %s146
    %p148 = scmp.eq.s32.totalorder %s28, 0
    %p149 = por %p147, %p148
    %s151 = sadd.s32 %s150, 1
    %p154 = scmp.eq.s32.totalorder %s22, 3
    %p155 = scmp.ne.s32.totalorder %s150, %s152
    %p156 = scmp.eq.s32.totalorder %s22, 0
    %p157 = por %p155, %p156
    %p158 = scmp.ne.s32.totalorder %s150, %s152
    %p159 = scmp.eq.s32.totalorder %s27, 3
    %p160 = por %p158, %p159
    %p161 = scmp.ne.s32.totalorder %s152, %s153
    %p162 = scmp.eq.s32.totalorder %s27, 0
    %p163 = por %p161, %p162
    %p164 = scmp.ne.s32.totalorder %s152, %s153
    %p165 = scmp.eq.s32.totalorder %s28, 3
    %p166 = por %p164, %p165
    %p168 = scmp.ne.s32.totalorder %s153, %s167
    %p169 = scmp.eq.s32.totalorder %s28, 0
    %p170 = por %p168, %p169
    %s172 = sadd.s32 %s171, 1
    %p175 = scmp.eq.s32.totalorder %s22, 3
    %p176 = scmp.ne.s32.totalorder %s171, %s173
    %p177 = scmp.eq.s32.totalorder %s22, 0
    %p178 = por %p176, %p177
    %p179 = scmp.ne.s32.totalorder %s171, %s173
    %p180 = scmp.eq.s32.totalorder %s27, 3
    %p181 = por %p179, %p180
    %p182 = scmp.ne.s32.totalorder %s173, %s174
    %p183 = scmp.eq.s32.totalorder %s27, 0
    %p184 = por %p182, %p183
    %p185 = scmp.ne.s32.totalorder %s173, %s174
    %p186 = scmp.eq.s32.totalorder %s28, 3
    %p187 = por %p185, %p186
    %p189 = scmp.ne.s32.totalorder %s174, %s188
    %p190 = scmp.eq.s32.totalorder %s28, 0
    %p191 = por %p189, %p190
    %s193 = sadd.s32 %s192, 1
    %p196 = scmp.eq.s32.totalorder %s22, 3
    %p197 = scmp.ne.s32.totalorder %s192, %s194
    %p198 = scmp.eq.s32.totalorder %s22, 0
    %p199 = por %p197, %p198
    %p200 = scmp.ne.s32.totalorder %s192, %s194
    %p201 = scmp.eq.s32.totalorder %s27, 3
    %p202 = por %p200, %p201
    %p203 = scmp.ne.s32.totalorder %s194, %s195
    %p204 = scmp.eq.s32.totalorder %s27, 0
    %p205 = por %p203, %p204
    %p206 = scmp.ne.s32.totalorder %s194, %s195
    %p207 = scmp.eq.s32.totalorder %s28, 3
    %p208 = por %p206, %p207
    %p210 = scmp.ne.s32.totalorder %s195, %s209
    %p211 = scmp.eq.s32.totalorder %s28, 0
    %p212 = por %p210, %p211
    %s214 = sadd.s32 %s213, 1
    %p217 = scmp.eq.s32.totalorder %s22, 3
    %p218 = scmp.ne.s32.totalorder %s213, %s215
    %p219 = scmp.eq.s32.totalorder %s22, 0
    %p220 = por %p218, %p219
    %p221 = scmp.ne.s32.totalorder %s213, %s215
    %p222 = scmp.eq.s32.totalorder %s27, 3
    %p223 = por %p221, %p222
    %p224 = scmp.ne.s32.totalorder %s215, %s216
    %p225 = scmp.eq.s32.totalorder %s27, 0
    %p226 = por %p224, %p225
    %p227 = scmp.ne.s32.totalorder %s215, %s216
    %p228 = scmp.eq.s32.totalorder %s28, 3
    %p229 = por %p227, %p228
    %p231 = scmp.ne.s32.totalorder %s216, %s230
    %p232 = scmp.eq.s32.totalorder %s28, 0
    %p233 = por %p231, %p232
    %s235 = sadd.s32 %s234, 1
    %p238 = scmp.eq.s32.totalorder %s22, 3
    %p239 = scmp.ne.s32.totalorder %s234, %s236
    %p240 = scmp.eq.s32.totalorder %s22, 0
    %p241 = por %p239, %p240
    %p242 = scmp.ne.s32.totalorder %s234, %s236
    %p243 = scmp.eq.s32.totalorder %s27, 3
    %p244 = por %p242, %p243
    %p245 = scmp.ne.s32.totalorder %s236, %s237
    %p246 = scmp.eq.s32.totalorder %s27, 0
    %p247 = por %p245, %p246
    %p248 = scmp.ne.s32.totalorder %s236, %s237
    %p249 = scmp.eq.s32.totalorder %s28, 3
    %p250 = por %p248, %p249
    %p252 = scmp.ne.s32.totalorder %s237, %s251
    %p253 = scmp.eq.s32.totalorder %s28, 0
    %p254 = por %p252, %p253
    %s256 = sadd.s32 %s255, 1
    %p259 = scmp.eq.s32.totalorder %s22, 3
    %p260 = scmp.ne.s32.totalorder %s255, %s257
    %p261 = scmp.eq.s32.totalorder %s22, 0
    %p262 = por %p260, %p261
    %p263 = scmp.ne.s32.totalorder %s255, %s257
    %p264 = scmp.eq.s32.totalorder %s27, 3
    %p265 = por %p263, %p264
    %p266 = scmp.ne.s32.totalorder %s257, %s258
    %p267 = scmp.eq.s32.totalorder %s27, 0
    %p268 = por %p266, %p267
    %p269 = scmp.ne.s32.totalorder %s257, %s258
    %p270 = scmp.eq.s32.totalorder %s28, 3
    %p271 = por %p269, %p270
    %p273 = scmp.ne.s32.totalorder %s258, %s272
    %p274 = scmp.eq.s32.totalorder %s28, 0
    %p275 = por %p273, %p274
    %s277 = sadd.s32 %s276, 1
    %p280 = scmp.eq.s32.totalorder %s22, 3
    %p281 = scmp.ne.s32.totalorder %s276, %s278
    %p282 = scmp.eq.s32.totalorder %s22, 0
    %p283 = por %p281, %p282
    %p284 = scmp.ne.s32.totalorder %s276, %s278
    %p285 = scmp.eq.s32.totalorder %s27, 3
    %p286 = por %p284, %p285
    %p287 = scmp.ne.s32.totalorder %s278, %s279
    %p288 = scmp.eq.s32.totalorder %s27, 0
    %p289 = por %p287, %p288
    %p290 = scmp.ne.s32.totalorder %s278, %s279
    %p291 = scmp.eq.s32.totalorder %s28, 3
    %p292 = por %p290, %p291
    %p294 = scmp.ne.s32.totalorder %s279, %s293
    %p295 = scmp.eq.s32.totalorder %s28, 0
    %p296 = por %p294, %p295
    %s298 = sadd.s32 %s297, 1
    %p301 = scmp.eq.s32.totalorder %s22, 3
    %p302 = scmp.ne.s32.totalorder %s297, %s299
    %p303 = scmp.eq.s32.totalorder %s22, 0
    %p304 = por %p302, %p303
    %p305 = scmp.ne.s32.totalorder %s297, %s299
    %p306 = scmp.eq.s32.totalorder %s27, 3
    %p307 = por %p305, %p306
    %p308 = scmp.ne.s32.totalorder %s299, %s300
    %p309 = scmp.eq.s32.totalorder %s27, 0
    %p310 = por %p308, %p309
    %p311 = scmp.ne.s32.totalorder %s299, %s300
    %p312 = scmp.eq.s32.totalorder %s28, 3
    %p313 = por %p311, %p312
    %p315 = scmp.ne.s32.totalorder %s300, %s314
    %p316 = scmp.eq.s32.totalorder %s28, 0
    %p317 = por %p315, %p316
    %s319 = sadd.s32 %s318, 1
    %p322 = scmp.eq.s32.totalorder %s22, 3
    %p323 = scmp.ne.s32.totalorder %s318, %s320
    %p324 = scmp.eq.s32.totalorder %s22, 0
    %p325 = por %p323, %p324
    %p326 = scmp.ne.s32.totalorder %s318, %s320
    %p327 = scmp.eq.s32.totalorder %s27, 3
    %p328 = por %p326, %p327
    %p329 = scmp.ne.s32.totalorder %s320, %s321
    %p330 = scmp.eq.s32.totalorder %s27, 0
    %p331 = por %p329, %p330
    %p332 = scmp.ne.s32.totalorder %s320, %s321
    %p333 = scmp.eq.s32.totalorder %s28, 3
    %p334 = por %p332, %p333
    %p336 = scmp.ne.s32.totalorder %s321, %s335
    %p337 = scmp.eq.s32.totalorder %s28, 0
    %p338 = por %p336, %p337
    %s339 = ssub.s32 %s22, %s29
    %p340 = scmp.eq.s32.totalorder %s339, 0
    %s342 = sadd.s32 %s341, 1
    %s343 = scalar_select %p340, %s341, %s342
    %p346 = pneg %p340
    %p347 = scmp.eq.s32.totalorder %s22, 3
    %p348 = por %p346, %p347
    %p349 = scmp.ne.s32.totalorder %s341, %s344
    %p350 = scmp.eq.s32.totalorder %s22, 0
    %p351 = por %p349, %p350
    %p352 = scmp.ne.s32.totalorder %s341, %s344
    %p353 = scmp.eq.s32.totalorder %s27, 3
    %p354 = por %p352, %p353
    %p355 = scmp.ne.s32.totalorder %s344, %s345
    %p356 = scmp.eq.s32.totalorder %s27, 0
    %p357 = por %p355, %p356
    %p358 = scmp.ne.s32.totalorder %s344, %s345
    %p359 = scmp.eq.s32.totalorder %s28, 3
    %p360 = por %p358, %p359
    %p362 = scmp.ne.s32.totalorder %s345, %s361
    %p363 = scmp.eq.s32.totalorder %s28, 0
    %p364 = por %p362, %p363
    %p365 = scmp.le.s32.totalorder 1, %s22
    %p366 = scmp.lt.s32.totalorder %s22, 5
    %p367 = pnand %p365, %p366
    %p368 = pneg %p367
    // Predicated region
    $region9: #{gat_net_forward.1} parent=5 // pred_check
      _
    $region10: #{gat_net_forward.1} parent=5 // pred_check_branch
      %370 = sbr.rel (%p367) target = $region12
    $region11: #{gat_net_forward.1} parent=5 // pred_region
      %s371 = ssub.s32 %s22, 1
      // Predicated region
      $region13: #{gat_net_forward.1} parent=11 // pred_check
        %p372 = pneg %p121
      $region14: #{gat_net_forward.1} parent=11 // pred_check_branch
        %374 = sbr.rel (%p372) target = $region16
      $region15: #{gat_net_forward.1} parent=11 // pred_region
        _
      $region16: #{gat_net_forward.1} parent=11 // pred_fallthru
        _
      // Predicated region
      $region17: #{gat_net_forward.1} parent=11 // pred_check
        %p375 = pneg %p142
      $region18: #{gat_net_forward.1} parent=11 // pred_check_branch
        %377 = sbr.rel (%p375) target = $region20
      $region19: #{gat_net_forward.1} parent=11 // pred_region
        _
      $region20: #{gat_net_forward.1} parent=11 // pred_fallthru
        _
      // Predicated region
      $region21: #{gat_net_forward.1} parent=11 // pred_check
        %p378 = pneg %p163
      $region22: #{gat_net_forward.1} parent=11 // pred_check_branch
        %380 = sbr.rel (%p378) target = $region24
      $region23: #{gat_net_forward.1} parent=11 // pred_region
        _
      $region24: #{gat_net_forward.1} parent=11 // pred_fallthru
        _
      // Predicated region
      $region25: #{gat_net_forward.1} parent=11 // pred_check
        %p381 = pneg %p184
      $region26: #{gat_net_forward.1} parent=11 // pred_check_branch
        %383 = sbr.rel (%p381) target = $region28
      $region27: #{gat_net_forward.1} parent=11 // pred_region
        _
      $region28: #{gat_net_forward.1} parent=11 // pred_fallthru
        _
      // Predicated region
      $region29: #{gat_net_forward.1} parent=11 // pred_check
        %p384 = pneg %p205
      $region30: #{gat_net_forward.1} parent=11 // pred_check_branch
        %386 = sbr.rel (%p384) target = $region32
      $region31: #{gat_net_forward.1} parent=11 // pred_region
        _
      $region32: #{gat_net_forward.1} parent=11 // pred_fallthru
        _
      // Predicated region
      $region33: #{gat_net_forward.1} parent=11 // pred_check
        %p387 = pneg %p226
      $region34: #{gat_net_forward.1} parent=11 // pred_check_branch
        %389 = sbr.rel (%p387) target = $region36
      $region35: #{gat_net_forward.1} parent=11 // pred_region
        _
      $region36: #{gat_net_forward.1} parent=11 // pred_fallthru
        _
      // Predicated region
      $region37: #{gat_net_forward.1} parent=11 // pred_check
        %p390 = pneg %p247
      $region38: #{gat_net_forward.1} parent=11 // pred_check_branch
        %392 = sbr.rel (%p390) target = $region40
      $region39: #{gat_net_forward.1} parent=11 // pred_region
        _
      $region40: #{gat_net_forward.1} parent=11 // pred_fallthru
        _
      // Predicated region
      $region41: #{gat_net_forward.1} parent=11 // pred_check
        %p393 = pneg %p268
      $region42: #{gat_net_forward.1} parent=11 // pred_check_branch
        %395 = sbr.rel (%p393) target = $region44
      $region43: #{gat_net_forward.1} parent=11 // pred_region
        _
      $region44: #{gat_net_forward.1} parent=11 // pred_fallthru
        _
      // Predicated region
      $region45: #{gat_net_forward.1} parent=11 // pred_check
        %p396 = pneg %p289
      $region46: #{gat_net_forward.1} parent=11 // pred_check_branch
        %398 = sbr.rel (%p396) target = $region48
      $region47: #{gat_net_forward.1} parent=11 // pred_region
        _
      $region48: #{gat_net_forward.1} parent=11 // pred_fallthru
        _
      // Predicated region
      $region49: #{gat_net_forward.1} parent=11 // pred_check
        %p399 = pneg %p310
      $region50: #{gat_net_forward.1} parent=11 // pred_check_branch
        %401 = sbr.rel (%p399) target = $region52
      $region51: #{gat_net_forward.1} parent=11 // pred_region
        _
      $region52: #{gat_net_forward.1} parent=11 // pred_fallthru
        _
      // Predicated region
      $region53: #{gat_net_forward.1} parent=11 // pred_check
        %p402 = pneg %p331
      $region54: #{gat_net_forward.1} parent=11 // pred_check_branch
        %404 = sbr.rel (%p402) target = $region56
      $region55: #{gat_net_forward.1} parent=11 // pred_region
        _
      $region56: #{gat_net_forward.1} parent=11 // pred_fallthru
        _
    $region12: #{gat_net_forward.1} parent=5 // pred_fallthru
      _
    %p405 = scmp.lt.s32.totalorder %s22, 4
    // Predicated region
    $region57: #{gat_net_forward.1} parent=5 // pred_check
      %p406 = pneg %p405
    $region58: #{gat_net_forward.1} parent=5 // pred_check_branch
      %408 = sbr.rel (%p406) target = $region60
    $region59: #{gat_net_forward.1} parent=5 // pred_region
      // Predicated region
      $region61: #{gat_net_forward.1} parent=59 // pred_check
        %p409 = pneg %p42
      $region62: #{gat_net_forward.1} parent=59 // pred_check_branch
        %411 = sbr.rel (%p409) target = $region64
      $region63: #{gat_net_forward.1} parent=59 // pred_region
        %p412 = scmp.lt.s32.totalorder %s22, 3
        %s413 = scalar_select %p412, %s22, 3
        %s414 = smul.addr %s413, 2
        %s415 = smul.addr %s414, 8
        %s416 = scalar_lea.vmem %s0, %s415
      $region64: #{gat_net_forward.1} parent=59 // pred_fallthru
        _
      // Predicated region
      $region65: #{gat_net_forward.1} parent=59 // pred_check
        %p417 = pneg %p68
      $region66: #{gat_net_forward.1} parent=59 // pred_check_branch
        %419 = sbr.rel (%p417) target = $region68
      $region67: #{gat_net_forward.1} parent=59 // pred_region
        %p420 = scmp.lt.s32.totalorder %s22, 3
        %s421 = scalar_select %p420, %s22, 3
        %s422 = smul.addr %s421, 2
        %s423 = smul.addr %s422, 8
        %s424 = scalar_lea.vmem %s1, %s423
      $region68: #{gat_net_forward.1} parent=59 // pred_fallthru
        _
      // Predicated region
      $region69: #{gat_net_forward.1} parent=59 // pred_check
        %p425 = pneg %p94
      $region70: #{gat_net_forward.1} parent=59 // pred_check_branch
        %427 = sbr.rel (%p425) target = $region72
      $region71: #{gat_net_forward.1} parent=59 // pred_region
        %p428 = scmp.lt.s32.totalorder %s22, 3
        %s429 = scalar_select %p428, %s22, 3
        %s430 = smul.addr %s429, 2
        %s431 = smul.addr %s430, 8
        %s432 = scalar_lea.vmem %s2, %s431
      $region72: #{gat_net_forward.1} parent=59 // pred_fallthru
        _
    $region60: #{gat_net_forward.1} parent=5 // pred_fallthru
      _
    %p433 = scmp.le.s32.totalorder 1, %s22
    %p434 = scmp.lt.s32.totalorder %s22, 5
    %p435 = pnand %p433, %p434
    %p436 = pneg %p435
    // Predicated region
    $region73: #{gat_net_forward.1} parent=5 // pred_check
      _
    $region74: #{gat_net_forward.1} parent=5 // pred_check_branch
      %438 = sbr.rel (%p435) target = $region76
    $region75: #{gat_net_forward.1} parent=5 // pred_region
      %s439 = ssub.s32 %s22, 1
      %p440 = scmp.lt.s32.totalorder %s27, 3
      %s441 = scalar_select %p440, %s27, 3
      %s442 = smul.addr %s441, 2
      %s443 = smul.addr %s442, 8
      %s444 = scalar_lea.vmem %s0, %s443
      %p445 = pneg %p48
      %p446 = pneg %p45
      %p447 = scmp.lt.s32.totalorder %s27, 3
      %s448 = scalar_select %p447, %s27, 3
      %s449 = smul.addr %s448, 2
      %s450 = smul.addr %s449, 8
      %s451 = scalar_lea.vmem %s1, %s450
      %p452 = pneg %p74
      %p453 = pneg %p71
      %p454 = scmp.lt.s32.totalorder %s27, 3
      %s455 = scalar_select %p454, %s27, 3
      %s456 = smul.addr %s455, 2
      %s457 = smul.addr %s456, 8
      %s458 = scalar_lea.vmem %s2, %s457
      %p459 = pneg %p100
      %p460 = pneg %p97
      %p461 = pneg %p121
      %p462 = pneg %p118
      %p463 = pneg %p142
      %p464 = pneg %p139
      %p465 = pneg %p163
      %p466 = pneg %p160
      %p467 = pneg %p184
      %p468 = pneg %p181
      %p469 = pneg %p205
      %p470 = pneg %p202
      %p471 = pneg %p226
      %p472 = pneg %p223
      %p473 = pneg %p247
      %p474 = pneg %p244
      %p475 = pneg %p268
      %p476 = pneg %p265
      %p477 = pneg %p289
      %p478 = pneg %p286
      %p479 = pneg %p310
      %p480 = pneg %p307
      %p481 = pneg %p331
      %p482 = pneg %p328
      %p483 = pneg %p357
      %p484 = pneg %p354
      %p485 = scmp.lt.s32.totalorder %s27, 3
      %s486 = scalar_select %p485, %s27, 3
      %s487 = scalar_lea.vmem %s14, %s486
      %p488 = scmp.lt.s32.totalorder %s27, 3
      %s489 = scalar_select %p488, %s27, 3
      %s490 = smul.addr %s489, 2
      %s491 = smul.addr %s490, 8
      %s492 = scalar_lea.vmem %s0, %s491
      %p493 = scmp.lt.s32.totalorder %s27, 3
      %s494 = scalar_select %p493, %s27, 3
      %s495 = smul.addr %s494, 2
      %s496 = smul.addr %s495, 8
      %s497 = scalar_lea.vmem %s1, %s496
      %p498 = scmp.lt.s32.totalorder %s27, 3
      %s499 = scalar_select %p498, %s27, 3
      %s500 = smul.addr %s499, 2
      %s501 = smul.addr %s500, 8
      %s502 = scalar_lea.vmem %s2, %s501
      %p503 = scmp.lt.s32.totalorder %s27, 3
      %s504 = scalar_select %p503, %s27, 3
      %s505 = scalar_lea.vmem %s14, %s504
      %v506 = vld [vmem:[%s502] sm:$0xff]
      %v507 = vld [vmem:[%s502 + $0x8] sm:$0xff]
      %v508 = vld [vmem:[%s8] sm:$0xf]
      %v509 = vld [vmem:[%s9] sm:$0xff]
      %v510 = vld [vmem:[%s9 + $0x8] sm:$0xff]
      %v511 = vld [vmem:[%s9 + $0x10] sm:$0xff]
      %v512 = vld [vmem:[%s9 + $0x18] sm:$0xff]
      %v513 = vld [vmem:[%s9 + $0x20] sm:$0xff]
      %v514 = vld [vmem:[%s9 + $0x28] sm:$0xff]
      %v515 = vld [vmem:[%s9 + $0x30] sm:$0xff]
      %v516 = vld [vmem:[%s9 + $0x38] sm:$0xff]
      %v517 = vld [vmem:[%s10] sm:$0xff]
      %v518 = vld [vmem:[%s10 + $0x8] sm:$0xff]
      %v519 = vld [vmem:[%s11] sm:$0xff]
      %v520 = vld [vmem:[%s11 + $0x8] sm:$0xff]
      %v521 = vld [vmem:[%s11 + $0x10] sm:$0xff]
      %v522 = vld [vmem:[%s11 + $0x18] sm:$0xff]
      %v523 = vld [vmem:[%s11 + $0x20] sm:$0xff]
      %v524 = vld [vmem:[%s11 + $0x28] sm:$0xff]
      %v525 = vld [vmem:[%s11 + $0x30] sm:$0xff]
      %v526 = vld [vmem:[%s11 + $0x38] sm:$0xff]
      %v527 = vld [vmem:[%s497] sm:$0xff]
      %v528 = vld [vmem:[%s497 + $0x8] sm:$0xff]
      %vm529 = vcmask 130048
      %v531 = vsel %vm529, %v527, 0
      %v534 = vsel %vm529, %v528, 0
      %536 = vmatprep.subr.mxu0 0.0
      %537 = vmatpush1.msra.mxu0 %v517
      %538 = vmatprep.subr.mxu0 0.0
      %539 = vmatpush1.msra.mxu0 %v518
      %540 = vmatprep.subr.mxu0 0.0
      %541 = vmatpush1.msra.mxu0 0.0
      %542 = vmatprep.subr.mxu0 0.0
      %543 = vmatpush1.msra.mxu0 0.0
      %544 = vmatprep.subr.mxu0 0.0
      %545 = vmatpush1.msra.mxu0 0.0
      %546 = vmatprep.subr.mxu0 0.0
      %547 = vmatpush1.msra.mxu0 0.0
      %548 = vmatprep.subr.mxu0 0.0
      %549 = vmatpush1.msra.mxu0 0.0
      %550 = vmatprep.subr.mxu0 0.0
      %551 = vmatpush1.msra.mxu0 0.0
      %552 = vmatprep.subr.mxu0 0.0
      %553 = vmatpush1.msra.mxu0 0.0
      %554 = vmatprep.subr.mxu0 0.0
      %555 = vmatpush1.msra.mxu0 0.0
      %556 = vmatprep.subr.mxu0 0.0
      %557 = vmatpush1.msra.mxu0 0.0
      %558 = vmatprep.subr.mxu0 0.0
      %559 = vmatpush1.msra.mxu0 0.0
      %560 = vmatprep.subr.mxu0 0.0
      %561 = vmatpush1.msra.mxu0 0.0
      %562 = vmatprep.subr.mxu0 0.0
      %563 = vmatpush1.msra.mxu0 0.0
      %564 = vmatprep.subr.mxu0 0.0
      %565 = vmatpush1.msra.mxu0 0.0
      %566 = vmatprep.subr.mxu0 0.0
      %567 = vmatpush1.msra.mxu0 0.0
      %568 = vmatprep.subr.mxu0 0.0
      %569 = vmatpush1.msra.mxu0 0.0
      %570 = vmatprep.subr.mxu0 0.0
      %571 = vmatpush1.msra.mxu0 0.0
      %572 = vmatprep.subr.mxu0 0.0
      %573 = vmatpush1.msra.mxu0 0.0
      %574 = vmatprep.subr.mxu0 0.0
      %575 = vmatpush1.msra.mxu0 0.0
      %576 = vmatprep.subr.mxu0 0.0
      %577 = vmatpush1.msra.mxu0 0.0
      %578 = vmatprep.subr.mxu0 0.0
      %579 = vmatpush1.msra.mxu0 0.0
      %580 = vmatprep.subr.mxu0 0.0
      %581 = vmatpush1.msra.mxu0 0.0
      %582 = vmatprep.subr.mxu0 0.0
      %583 = vmatpush1.msra.mxu0 0.0
      %584 = vmatprep.subr.mxu0 0.0
      %585 = vmatpush1.msra.mxu0 0.0
      %586 = vmatprep.subr.mxu0 0.0
      %587 = vmatpush1.msra.mxu0 0.0
      %588 = vmatprep.subr.mxu0 0.0
      %589 = vmatpush1.msra.mxu0 0.0
      %590 = vmatprep.subr.mxu0 0.0
      %591 = vmatpush1.msra.mxu0 0.0
      %592 = vmatprep.subr.mxu0 0.0
      %593 = vmatpush1.msra.mxu0 0.0
      %594 = vmatprep.subr.mxu0 0.0
      %595 = vmatpush1.msra.mxu0 0.0
      %596 = vmatprep.subr.mxu0 0.0
      %597 = vmatpush1.msra.mxu0 0.0
      %598 = vmatprep.subr.mxu0 0.0
      %599 = vmatpush1.msra.mxu0 0.0
      %600 = vmatprep.mubr.f32.mxu0 0.0
      %601 = vmatmul.mubr.f32.gmra.mrb[0].mxu0 %v531
      %v602 = vpop.f32.mrb[0].mxu0
      %v603 = vadd.f32 0.0, %v602
      %v604 = vpop.f32.mrb[0].mxu0
      %605 = vmatprep.mubr.f32.mxu0 0.0
      %606 = vmatmul.mubr.f32.gmra.mrb[0].mxu0 %v534
      %v607 = vpop.f32.mrb[0].mxu0
      %v608 = vadd.f32 0.0, %v607
      %v609 = vpop.f32.mrb[0].mxu0
      %610 = vdwg.mxu0
      %v611 = vld [vmem:[%s492] sm:$0xff]
      %v612 = vld [vmem:[%s492 + $0x8] sm:$0xff]
      %v613 = vld [vmem:[%s3] sm:$0xff]
      %v614 = vld [vmem:[%s3 + $0x8] sm:$0xff]
      %v615 = vld [vmem:[%s3 + $0x10] sm:$0xff]
      %v616 = vld [vmem:[%s3 + $0x18] sm:$0xf]
      %vm617 = vcmask 228352
      %v619 = vsel %vm617, %v611, 0
      %v622 = vsel %vm617, %v612, 0
      %vm624 = vcmask 1043456
      %v626 = vsel %vm624, %v616, 0
      %628 = vmatprep.subr.mxu0 0.0
      %629 = vmatpush1.msra.mxu0 %v613
      %630 = vmatprep.subr.mxu0 0.0
      %631 = vmatpush1.msra.mxu0 %v614
      %632 = vmatprep.subr.mxu0 0.0
      %633 = vmatpush1.msra.mxu0 %v615
      %634 = vmatprep.subr.mxu0 0.0
      %635 = vmatpush1.msra.mxu0 %v626
      %636 = vmatprep.subr.mxu0 0.0
      %637 = vmatpush1.msra.mxu0 0.0
      %638 = vmatprep.subr.mxu0 0.0
      %639 = vmatpush1.msra.mxu0 0.0
      %640 = vmatprep.subr.mxu0 0.0
      %641 = vmatpush1.msra.mxu0 0.0
      %642 = vmatprep.subr.mxu0 0.0
      %643 = vmatpush1.msra.mxu0 0.0
      %644 = vmatprep.subr.mxu0 0.0
      %645 = vmatpush1.msra.mxu0 0.0
      %646 = vmatprep.subr.mxu0 0.0
      %647 = vmatpush1.msra.mxu0 0.0
      %648 = vmatprep.subr.mxu0 0.0
      %649 = vmatpush1.msra.mxu0 0.0
      %650 = vmatprep.subr.mxu0 0.0
      %651 = vmatpush1.msra.mxu0 0.0
      %652 = vmatprep.subr.mxu0 0.0
      %653 = vmatpush1.msra.mxu0 0.0
      %654 = vmatprep.subr.mxu0 0.0
      %655 = vmatpush1.msra.mxu0 0.0
      %656 = vmatprep.subr.mxu0 0.0
      %657 = vmatpush1.msra.mxu0 0.0
      %658 = vmatprep.subr.mxu0 0.0
      %659 = vmatpush1.msra.mxu0 0.0
      %660 = vmatprep.subr.mxu0 0.0
      %661 = vmatpush1.msra.mxu0 0.0
      %662 = vmatprep.subr.mxu0 0.0
      %663 = vmatpush1.msra.mxu0 0.0
      %664 = vmatprep.subr.mxu0 0.0
      %665 = vmatpush1.msra.mxu0 0.0
      %666 = vmatprep.subr.mxu0 0.0
      %667 = vmatpush1.msra.mxu0 0.0
      %668 = vmatprep.subr.mxu0 0.0
      %669 = vmatpush1.msra.mxu0 0.0
      %670 = vmatprep.subr.mxu0 0.0
      %671 = vmatpush1.msra.mxu0 0.0
      %672 = vmatprep.subr.mxu0 0.0
      %673 = vmatpush1.msra.mxu0 0.0
      %674 = vmatprep.subr.mxu0 0.0
      %675 = vmatpush1.msra.mxu0 0.0
      %676 = vmatprep.subr.mxu0 0.0
      %677 = vmatpush1.msra.mxu0 0.0
      %678 = vmatprep.subr.mxu0 0.0
      %679 = vmatpush1.msra.mxu0 0.0
      %680 = vmatprep.subr.mxu0 0.0
      %681 = vmatpush1.msra.mxu0 0.0
      %682 = vmatprep.subr.mxu0 0.0
      %683 = vmatpush1.msra.mxu0 0.0
      %684 = vmatprep.subr.mxu0 0.0
      %685 = vmatpush1.msra.mxu0 0.0
      %686 = vmatprep.subr.mxu0 0.0
      %687 = vmatpush1.msra.mxu0 0.0
      %688 = vmatprep.subr.mxu0 0.0
      %689 = vmatpush1.msra.mxu0 0.0
      %690 = vmatprep.subr.mxu0 0.0
      %691 = vmatpush1.msra.mxu0 0.0
      %692 = vmatprep.mubr.f32.mxu0 0.0
      %693 = vmatmul.mubr.f32.gmra.mrb[0].mxu0 %v619
      %v694 = vpop.f32.mrb[0].mxu0
      %v695 = vadd.f32 0.0, %v694
      %v696 = vpop.f32.mrb[0].mxu0
      %697 = vmatprep.mubr.f32.mxu0 0.0
      %698 = vmatmul.mubr.f32.gmra.mrb[0].mxu0 %v622
      %v699 = vpop.f32.mrb[0].mxu0
      %v700 = vadd.f32 0.0, %v699
      %v701 = vpop.f32.mrb[0].mxu0
      %702 = vdwg.mxu0
      loop: start=0, step=1, limit=2
      $region77: #{gat_net_forward.1} parent=75 // loop_pre_header
        _
      $region78: #{gat_net_forward.1} parent=75 // loop_header
        %s704 = sphi 0, %s708
        %p705 = scmp.ge.s32.totalorder %s704, 2
        %v709 = vphi %v695, %v1515
        %v710 = vphi %v700, %v1516
      $region79: #{gat_net_forward.1} parent=75 // loop_header_branch
        %707 = sbr.rel (%p705) target = $region83
      $region80: #{gat_net_forward.1} parent=75 // loop_body
        %s711 = smul.u32 %s704, 32
        %s712 = scalar_lea.vmem %s4, %s711
        %v713 = vld [vmem:[%s712] sm:$0xff]
        %v714 = vld [vmem:[%s712 + $0x8] sm:$0xff]
        %v715 = vld [vmem:[%s712 + $0x10] sm:$0xff]
        %v716 = vld [vmem:[%s712 + $0x18] sm:$0xff]
        %vm717 = vcmask 261120
        %v719 = vsel %vm717, %v709, 0
        %v722 = vsel %vm717, %v710, 0
        %724 = vmatprep.subr.mxu0 0.0
        %725 = vmatpush1.msra.mxu0 %v713
        %726 = vmatprep.subr.mxu0 0.0
        %727 = vmatpush1.msra.mxu0 %v714
        %728 = vmatprep.subr.mxu0 0.0
        %729 = vmatpush1.msra.mxu0 %v715
        %730 = vmatprep.subr.mxu0 0.0
        %731 = vmatpush1.msra.mxu0 %v716
        %732 = vmatprep.subr.mxu0 0.0
        %733 = vmatpush1.msra.mxu0 0.0
        %734 = vmatprep.subr.mxu0 0.0
        %735 = vmatpush1.msra.mxu0 0.0
        %736 = vmatprep.subr.mxu0 0.0
        %737 = vmatpush1.msra.mxu0 0.0
        %738 = vmatprep.subr.mxu0 0.0
        %739 = vmatpush1.msra.mxu0 0.0
        %740 = vmatprep.subr.mxu0 0.0
        %741 = vmatpush1.msra.mxu0 0.0
        %742 = vmatprep.subr.mxu0 0.0
        %743 = vmatpush1.msra.mxu0 0.0
        %744 = vmatprep.subr.mxu0 0.0
        %745 = vmatpush1.msra.mxu0 0.0
        %746 = vmatprep.subr.mxu0 0.0
        %747 = vmatpush1.msra.mxu0 0.0
        %748 = vmatprep.subr.mxu0 0.0
        %749 = vmatpush1.msra.mxu0 0.0
        %750 = vmatprep.subr.mxu0 0.0
        %751 = vmatpush1.msra.mxu0 0.0
        %752 = vmatprep.subr.mxu0 0.0
        %753 = vmatpush1.msra.mxu0 0.0
        %754 = vmatprep.subr.mxu0 0.0
        %755 = vmatpush1.msra.mxu0 0.0
        %756 = vmatprep.subr.mxu0 0.0
        %757 = vmatpush1.msra.mxu0 0.0
        %758 = vmatprep.subr.mxu0 0.0
        %759 = vmatpush1.msra.mxu0 0.0
        %760 = vmatprep.subr.mxu0 0.0
        %761 = vmatpush1.msra.mxu0 0.0
        %762 = vmatprep.subr.mxu0 0.0
        %763 = vmatpush1.msra.mxu0 0.0
        %764 = vmatprep.subr.mxu0 0.0
        %765 = vmatpush1.msra.mxu0 0.0
        %766 = vmatprep.subr.mxu0 0.0
        %767 = vmatpush1.msra.mxu0 0.0
        %768 = vmatprep.subr.mxu0 0.0
        %769 = vmatpush1.msra.mxu0 0.0
        %770 = vmatprep.subr.mxu0 0.0
        %771 = vmatpush1.msra.mxu0 0.0
        %772 = vmatprep.subr.mxu0 0.0
        %773 = vmatpush1.msra.mxu0 0.0
        %774 = vmatprep.subr.mxu0 0.0
        %775 = vmatpush1.msra.mxu0 0.0
        %776 = vmatprep.subr.mxu0 0.0
        %777 = vmatpush1.msra.mxu0 0.0
        %778 = vmatprep.subr.mxu0 0.0
        %779 = vmatpush1.msra.mxu0 0.0
        %780 = vmatprep.subr.mxu0 0.0
        %781 = vmatpush1.msra.mxu0 0.0
        %782 = vmatprep.subr.mxu0 0.0
        %783 = vmatpush1.msra.mxu0 0.0
        %784 = vmatprep.subr.mxu0 0.0
        %785 = vmatpush1.msra.mxu0 0.0
        %786 = vmatprep.subr.mxu0 0.0
        %787 = vmatpush1.msra.mxu0 0.0
        %788 = vmatprep.mubr.f32.mxu0 0.0
        %789 = vmatmul.mubr.f32.gmra.mrb[0].mxu0 %v719
        %v790 = vpop.f32.mrb[0].mxu0
        %v791 = vadd.f32 0.0, %v790
        %v792 = vpop.f32.mrb[0].mxu0
        %793 = vmatprep.mubr.f32.mxu0 0.0
        %794 = vmatmul.mubr.f32.gmra.mrb[0].mxu0 %v722
        %v795 = vpop.f32.mrb[0].mxu0
        %v796 = vadd.f32 0.0, %v795
        %v797 = vpop.f32.mrb[0].mxu0
        %798 = vdwg.mxu0
        %s799 = scalar_lea.vmem %s5, %s711
        %v800 = vld [vmem:[%s799] sm:$0xff]
        %v801 = vld [vmem:[%s799 + $0x8] sm:$0xff]
        %v802 = vld [vmem:[%s799 + $0x10] sm:$0xff]
        %v803 = vld [vmem:[%s799 + $0x18] sm:$0xff]
        %v805 = vsel %vm717, %v791, 0
        %v808 = vsel %vm717, %v796, 0
        %810 = vmatprep.subr.mxu0 0.0
        %811 = vmatpush1.msra.mxu0 %v800
        %812 = vmatprep.subr.mxu0 0.0
        %813 = vmatpush1.msra.mxu0 %v801
        %814 = vmatprep.subr.mxu0 0.0
        %815 = vmatpush1.msra.mxu0 %v802
        %816 = vmatprep.subr.mxu0 0.0
        %817 = vmatpush1.msra.mxu0 %v803
        %818 = vmatprep.subr.mxu0 0.0
        %819 = vmatpush1.msra.mxu0 0.0
        %820 = vmatprep.subr.mxu0 0.0
        %821 = vmatpush1.msra.mxu0 0.0
        %822 = vmatprep.subr.mxu0 0.0
        %823 = vmatpush1.msra.mxu0 0.0
        %824 = vmatprep.subr.mxu0 0.0
        %825 = vmatpush1.msra.mxu0 0.0
        %826 = vmatprep.subr.mxu0 0.0
        %827 = vmatpush1.msra.mxu0 0.0
        %828 = vmatprep.subr.mxu0 0.0
        %829 = vmatpush1.msra.mxu0 0.0
        %830 = vmatprep.subr.mxu0 0.0
        %831 = vmatpush1.msra.mxu0 0.0
        %832 = vmatprep.subr.mxu0 0.0
        %833 = vmatpush1.msra.mxu0 0.0
        %834 = vmatprep.subr.mxu0 0.0
        %835 = vmatpush1.msra.mxu0 0.0
        %836 = vmatprep.subr.mxu0 0.0
        %837 = vmatpush1.msra.mxu0 0.0
        %838 = vmatprep.subr.mxu0 0.0
        %839 = vmatpush1.msra.mxu0 0.0
        %840 = vmatprep.subr.mxu0 0.0
        %841 = vmatpush1.msra.mxu0 0.0
        %842 = vmatprep.subr.mxu0 0.0
        %843 = vmatpush1.msra.mxu0 0.0
        %844 = vmatprep.subr.mxu0 0.0
        %845 = vmatpush1.msra.mxu0 0.0
        %846 = vmatprep.subr.mxu0 0.0
        %847 = vmatpush1.msra.mxu0 0.0
        %848 = vmatprep.subr.mxu0 0.0
        %849 = vmatpush1.msra.mxu0 0.0
        %850 = vmatprep.subr.mxu0 0.0
        %851 = vmatpush1.msra.mxu0 0.0
        %852 = vmatprep.subr.mxu0 0.0
        %853 = vmatpush1.msra.mxu0 0.0
        %854 = vmatprep.subr.mxu0 0.0
        %855 = vmatpush1.msra.mxu0 0.0
        %856 = vmatprep.subr.mxu0 0.0
        %857 = vmatpush1.msra.mxu0 0.0
        %858 = vmatprep.subr.mxu0 0.0
        %859 = vmatpush1.msra.mxu0 0.0
        %860 = vmatprep.subr.mxu0 0.0
        %861 = vmatpush1.msra.mxu0 0.0
        %862 = vmatprep.subr.mxu0 0.0
        %863 = vmatpush1.msra.mxu0 0.0
        %864 = vmatprep.subr.mxu0 0.0
        %865 = vmatpush1.msra.mxu0 0.0
        %866 = vmatprep.subr.mxu0 0.0
        %867 = vmatpush1.msra.mxu0 0.0
        %868 = vmatprep.subr.mxu0 0.0
        %869 = vmatpush1.msra.mxu0 0.0
        %870 = vmatprep.subr.mxu0 0.0
        %871 = vmatpush1.msra.mxu0 0.0
        %872 = vmatprep.subr.mxu0 0.0
        %873 = vmatpush1.msra.mxu0 0.0
        %874 = vmatprep.mubr.f32.mxu0 0.0
        %875 = vmatmul.mubr.f32.gmra.mrb[0].mxu0 %v805
        %v876 = vpop.f32.mrb[0].mxu0
        %v877 = vadd.f32 0.0, %v876
        %v878 = vpop.f32.mrb[0].mxu0
        %879 = vmatprep.mubr.f32.mxu0 0.0
        %880 = vmatmul.mubr.f32.gmra.mrb[0].mxu0 %v808
        %v881 = vpop.f32.mrb[0].mxu0
        %v882 = vadd.f32 0.0, %v881
        %v883 = vpop.f32.mrb[0].mxu0
        %884 = vdwg.mxu0
        %vm885 = vcmask 31744
        %v887 = vsel %vm885, %v877, 0
        %v890 = vsel %vm885, %v882, 0
        %v893 = vsel %vm624, %v508, 0
        %895 = vmatprep.subr.mxu0 0.0
        %896 = vmatpush1.msra.mxu0 %v893
        %897 = vmatprep.subr.mxu0 0.0
        %898 = vmatpush1.msra.mxu0 0.0
        %899 = vmatprep.subr.mxu0 0.0
        %900 = vmatpush1.msra.mxu0 0.0
        %901 = vmatprep.subr.mxu0 0.0
        %902 = vmatpush1.msra.mxu0 0.0
        %903 = vmatprep.subr.mxu0 0.0
        %904 = vmatpush1.msra.mxu0 0.0
        %905 = vmatprep.subr.mxu0 0.0
        %906 = vmatpush1.msra.mxu0 0.0
        %907 = vmatprep.subr.mxu0 0.0
        %908 = vmatpush1.msra.mxu0 0.0
        %909 = vmatprep.subr.mxu0 0.0
        %910 = vmatpush1.msra.mxu0 0.0
        %911 = vmatprep.subr.mxu0 0.0
        %912 = vmatpush1.msra.mxu0 0.0
        %913 = vmatprep.subr.mxu0 0.0
        %914 = vmatpush1.msra.mxu0 0.0
        %915 = vmatprep.subr.mxu0 0.0
        %916 = vmatpush1.msra.mxu0 0.0
        %917 = vmatprep.subr.mxu0 0.0
        %918 = vmatpush1.msra.mxu0 0.0
        %919 = vmatprep.subr.mxu0 0.0
        %920 = vmatpush1.msra.mxu0 0.0
        %921 = vmatprep.subr.mxu0 0.0
        %922 = vmatpush1.msra.mxu0 0.0
        %923 = vmatprep.subr.mxu0 0.0
        %924 = vmatpush1.msra.mxu0 0.0
        %925 = vmatprep.subr.mxu0 0.0
        %926 = vmatpush1.msra.mxu0 0.0
        %927 = vmatprep.subr.mxu0 0.0
        %928 = vmatpush1.msra.mxu0 0.0
        %929 = vmatprep.subr.mxu0 0.0
        %930 = vmatpush1.msra.mxu0 0.0
        %931 = vmatprep.subr.mxu0 0.0
        %932 = vmatpush1.msra.mxu0 0.0
        %933 = vmatprep.subr.mxu0 0.0
        %934 = vmatpush1.msra.mxu0 0.0
        %935 = vmatprep.subr.mxu0 0.0
        %936 = vmatpush1.msra.mxu0 0.0
        %937 = vmatprep.subr.mxu0 0.0
        %938 = vmatpush1.msra.mxu0 0.0
        %939 = vmatprep.subr.mxu0 0.0
        %940 = vmatpush1.msra.mxu0 0.0
        %941 = vmatprep.subr.mxu0 0.0
        %942 = vmatpush1.msra.mxu0 0.0
        %943 = vmatprep.subr.mxu0 0.0
        %944 = vmatpush1.msra.mxu0 0.0
        %945 = vmatprep.subr.mxu0 0.0
        %946 = vmatpush1.msra.mxu0 0.0
        %947 = vmatprep.subr.mxu0 0.0
        %948 = vmatpush1.msra.mxu0 0.0
        %949 = vmatprep.subr.mxu0 0.0
        %950 = vmatpush1.msra.mxu0 0.0
        %951 = vmatprep.subr.mxu0 0.0
        %952 = vmatpush1.msra.mxu0 0.0
        %953 = vmatprep.subr.mxu0 0.0
        %954 = vmatpush1.msra.mxu0 0.0
        %955 = vmatprep.subr.mxu0 0.0
        %956 = vmatpush1.msra.mxu0 0.0
        %957 = vmatprep.subr.mxu0 0.0
        %958 = vmatpush1.msra.mxu0 0.0
        %959 = vmatprep.mubr.f32.mxu0 0.0
        %960 = vmatmul.mubr.f32.gmra.mrb[0].mxu0 %v887
        %v961 = vpop.f32.mrb[0].mxu0
        %v962 = vadd.f32 0.0, %v961
        %v963 = vpop.f32.mrb[0].mxu0
        %964 = vmatprep.mubr.f32.mxu0 0.0
        %965 = vmatmul.mubr.f32.gmra.mrb[0].mxu0 %v890
        %v966 = vpop.f32.mrb[0].mxu0
        %v967 = vadd.f32 0.0, %v966
        %v968 = vpop.f32.mrb[0].mxu0
        %969 = vdwg.mxu0
        %v970 = vmul.f32 %v962, %v517
        %v971 = vmul.f32 %v967, %v518
        %vm972 = vcmask 523264
        %v973 = vsel %vm972, %v970, 0.0
        %v974 = vsel %vm972, %v971, 0.0
        %v975 = vadd.f32 %v973, %v974
        %v976 = vrot.slane %v975, 4
        %v977 = vadd.f32 %v975, %v976
        %v978 = vrot.slane %v977, 2
        %v979 = vadd.f32 %v977, %v978
        %v980 = vrot.slane %v979, 1
        %v981 = vadd.f32 %v979, %v980
        %982 = vrot.lane.b32.xlu0 %v877, 124
        %v983 = vpop.permute.xlu0 %982
        %984 = vrot.lane.b32.xlu0 %v882, 124
        %v985 = vpop.permute.xlu0 %984
        %v986 = vsel %vm885, %v983, 0
        %v988 = vsel %vm885, %v985, 0
        %990 = vmatprep.subr.mxu0 0.0
        %991 = vmatpush1.msra.mxu0 %v893
        %992 = vmatprep.subr.mxu0 0.0
        %993 = vmatpush1.msra.mxu0 0.0
        %994 = vmatprep.subr.mxu0 0.0
        %995 = vmatpush1.msra.mxu0 0.0
        %996 = vmatprep.subr.mxu0 0.0
        %997 = vmatpush1.msra.mxu0 0.0
        %998 = vmatprep.subr.mxu0 0.0
        %999 = vmatpush1.msra.mxu0 0.0
        %1000 = vmatprep.subr.mxu0 0.0
        %1001 = vmatpush1.msra.mxu0 0.0
        %1002 = vmatprep.subr.mxu0 0.0
        %1003 = vmatpush1.msra.mxu0 0.0
        %1004 = vmatprep.subr.mxu0 0.0
        %1005 = vmatpush1.msra.mxu0 0.0
        %1006 = vmatprep.subr.mxu0 0.0
        %1007 = vmatpush1.msra.mxu0 0.0
        %1008 = vmatprep.subr.mxu0 0.0
        %1009 = vmatpush1.msra.mxu0 0.0
        %1010 = vmatprep.subr.mxu0 0.0
        %1011 = vmatpush1.msra.mxu0 0.0
        %1012 = vmatprep.subr.mxu0 0.0
        %1013 = vmatpush1.msra.mxu0 0.0
        %1014 = vmatprep.subr.mxu0 0.0
        %1015 = vmatpush1.msra.mxu0 0.0
        %1016 = vmatprep.subr.mxu0 0.0
        %1017 = vmatpush1.msra.mxu0 0.0
        %1018 = vmatprep.subr.mxu0 0.0
        %1019 = vmatpush1.msra.mxu0 0.0
        %1020 = vmatprep.subr.mxu0 0.0
        %1021 = vmatpush1.msra.mxu0 0.0
        %1022 = vmatprep.subr.mxu0 0.0
        %1023 = vmatpush1.msra.mxu0 0.0
        %1024 = vmatprep.subr.mxu0 0.0
        %1025 = vmatpush1.msra.mxu0 0.0
        %1026 = vmatprep.subr.mxu0 0.0
        %1027 = vmatpush1.msra.mxu0 0.0
        %1028 = vmatprep.subr.mxu0 0.0
        %1029 = vmatpush1.msra.mxu0 0.0
        %1030 = vmatprep.subr.mxu0 0.0
        %1031 = vmatpush1.msra.mxu0 0.0
        %1032 = vmatprep.subr.mxu0 0.0
        %1033 = vmatpush1.msra.mxu0 0.0
        %1034 = vmatprep.subr.mxu0 0.0
        %1035 = vmatpush1.msra.mxu0 0.0
        %1036 = vmatprep.subr.mxu0 0.0
        %1037 = vmatpush1.msra.mxu0 0.0
        %1038 = vmatprep.subr.mxu0 0.0
        %1039 = vmatpush1.msra.mxu0 0.0
        %1040 = vmatprep.subr.mxu0 0.0
        %1041 = vmatpush1.msra.mxu0 0.0
        %1042 = vmatprep.subr.mxu0 0.0
        %1043 = vmatpush1.msra.mxu0 0.0
        %1044 = vmatprep.subr.mxu0 0.0
        %1045 = vmatpush1.msra.mxu0 0.0
        %1046 = vmatprep.subr.mxu0 0.0
        %1047 = vmatpush1.msra.mxu0 0.0
        %1048 = vmatprep.subr.mxu0 0.0
        %1049 = vmatpush1.msra.mxu0 0.0
        %1050 = vmatprep.subr.mxu0 0.0
        %1051 = vmatpush1.msra.mxu0 0.0
        %1052 = vmatprep.subr.mxu0 0.0
        %1053 = vmatpush1.msra.mxu0 0.0
        %1054 = vmatprep.mubr.f32.mxu0 0.0
        %1055 = vmatmul.mubr.f32.gmra.mrb[0].mxu0 %v986
        %v1056 = vpop.f32.mrb[0].mxu0
        %v1057 = vadd.f32 %v981, %v1056
        %v1058 = vpop.f32.mrb[0].mxu0
        %1059 = vmatprep.mubr.f32.mxu0 0.0
        %1060 = vmatmul.mubr.f32.gmra.mrb[0].mxu0 %v988
        %v1061 = vpop.f32.mrb[0].mxu0
        %v1062 = vadd.f32 %v981, %v1061
        %v1063 = vpop.f32.mrb[0].mxu0
        %1064 = vdwg.mxu0
        %vm1065 = vcmp.ge.f32.partialorder %v1057, 0.0
        %vm1066 = vcmp.ge.f32.partialorder %v1062, 0.0
        %v1067 = vmul.f32 %v1057, 0.01
        %v1068 = vmul.f32 %v1062, 0.01
        %v1069 = vsel %vm1065, %v1057, %v1067
        %v1070 = vsel %vm1066, %v1062, %v1068
        %v1071 = vadd.f32 %v1069, %v603
        %v1072 = vadd.f32 %v1070, %v608
        %v1073 = vsel %vm972, %v1071, -inf
        %1074 = vmax.xlane.f32.xlu0 %v1073
        %v1075 = vpop.xlane.xlu0 %1074
        %v1076 = vsel %vm972, %v1072, -inf
        %1077 = vmax.xlane.f32.xlu0 %v1076
        %v1078 = vpop.xlane.xlu0 %1077
        %v1079 = vsub.f32 %v1071, %v1075
        %v1080 = vsub.f32 %v1072, %v1078
        %v1081 = vmul.f32 %v1079, 1.442695
        %v1082 = vpow.pop %v1081
        %v1083 = vmul.f32 %v1080, 1.442695
        %v1084 = vpow.pop %v1083
        %v1086 = vsel %vm972, %v1082, 0
        %v1089 = vsel %vm972, %v1084, 0
        %1091 = vmatprep.subr.mxu0 0.0
        %1092 = vmatpush1.msra.mxu0 %v509
        %1093 = vmatprep.subr.mxu0 0.0
        %1094 = vmatpush1.msra.mxu0 %v510
        %1095 = vmatprep.subr.mxu0 0.0
        %1096 = vmatpush1.msra.mxu0 %v511
        %1097 = vmatprep.subr.mxu0 0.0
        %1098 = vmatpush1.msra.mxu0 %v512
        %1099 = vmatprep.subr.mxu0 0.0
        %1100 = vmatpush1.msra.mxu0 %v513
        %1101 = vmatprep.subr.mxu0 0.0
        %1102 = vmatpush1.msra.mxu0 %v514
        %1103 = vmatprep.subr.mxu0 0.0
        %1104 = vmatpush1.msra.mxu0 %v515
        %1105 = vmatprep.subr.mxu0 0.0
        %1106 = vmatpush1.msra.mxu0 %v516
        %1107 = vmatprep.subr.mxu0 0.0
        %1108 = vmatpush1.msra.mxu0 0.0
        %1109 = vmatprep.subr.mxu0 0.0
        %1110 = vmatpush1.msra.mxu0 0.0
        %1111 = vmatprep.subr.mxu0 0.0
        %1112 = vmatpush1.msra.mxu0 0.0
        %1113 = vmatprep.subr.mxu0 0.0
        %1114 = vmatpush1.msra.mxu0 0.0
        %1115 = vmatprep.subr.mxu0 0.0
        %1116 = vmatpush1.msra.mxu0 0.0
        %1117 = vmatprep.subr.mxu0 0.0
        %1118 = vmatpush1.msra.mxu0 0.0
        %1119 = vmatprep.subr.mxu0 0.0
        %1120 = vmatpush1.msra.mxu0 0.0
        %1121 = vmatprep.subr.mxu0 0.0
        %1122 = vmatpush1.msra.mxu0 0.0
        %1123 = vmatprep.subr.mxu0 0.0
        %1124 = vmatpush1.msra.mxu0 0.0
        %1125 = vmatprep.subr.mxu0 0.0
        %1126 = vmatpush1.msra.mxu0 0.0
        %1127 = vmatprep.subr.mxu0 0.0
        %1128 = vmatpush1.msra.mxu0 0.0
        %1129 = vmatprep.subr.mxu0 0.0
        %1130 = vmatpush1.msra.mxu0 0.0
        %1131 = vmatprep.subr.mxu0 0.0
        %1132 = vmatpush1.msra.mxu0 0.0
        %1133 = vmatprep.subr.mxu0 0.0
        %1134 = vmatpush1.msra.mxu0 0.0
        %1135 = vmatprep.subr.mxu0 0.0
        %1136 = vmatpush1.msra.mxu0 0.0
        %1137 = vmatprep.subr.mxu0 0.0
        %1138 = vmatpush1.msra.mxu0 0.0
        %1139 = vmatprep.subr.mxu0 0.0
        %1140 = vmatpush1.msra.mxu0 0.0
        %1141 = vmatprep.subr.mxu0 0.0
        %1142 = vmatpush1.msra.mxu0 0.0
        %1143 = vmatprep.subr.mxu0 0.0
        %1144 = vmatpush1.msra.mxu0 0.0
        %1145 = vmatprep.subr.mxu0 0.0
        %1146 = vmatpush1.msra.mxu0 0.0
        %1147 = vmatprep.subr.mxu0 0.0
        %1148 = vmatpush1.msra.mxu0 0.0
        %1149 = vmatprep.subr.mxu0 0.0
        %1150 = vmatpush1.msra.mxu0 0.0
        %1151 = vmatprep.subr.mxu0 0.0
        %1152 = vmatpush1.msra.mxu0 0.0
        %1153 = vmatprep.subr.mxu0 0.0
        %1154 = vmatpush1.msra.mxu0 0.0
        %1155 = vmatprep.mubr.f32.mxu0 0.0
        %1156 = vmatmul.mubr.f32.gmra.mrb[0].mxu0 %v1086
        %v1157 = vpop.f32.mrb[0].mxu0
        %v1158 = vadd.f32 0.0, %v1157
        %v1159 = vpop.f32.mrb[0].mxu0
        %1160 = vmatprep.mubr.f32.mxu0 0.0
        %1161 = vmatmul.mubr.f32.gmra.mrb[0].mxu0 %v1089
        %v1162 = vpop.f32.mrb[0].mxu0
        %v1163 = vadd.f32 0.0, %v1162
        %v1164 = vpop.f32.mrb[0].mxu0
        %1165 = vdwg.mxu0
        %v1166 = vmax.f32 %v1158, 1e-30
        %v1167 = vmax.f32 %v1163, 1e-30
        %v1168 = vrcp.pop %v1166
        %v1169 = vrcp.pop %v1167
        %v1171 = vsel %vm885, %v1168, 0
        %v1174 = vsel %vm885, %v1169, 0
        %1176 = vmatprep.subr.mxu0 0.0
        %1177 = vmatpush1.msra.mxu0 %v893
        %1178 = vmatprep.subr.mxu0 0.0
        %1179 = vmatpush1.msra.mxu0 0.0
        %1180 = vmatprep.subr.mxu0 0.0
        %1181 = vmatpush1.msra.mxu0 0.0
        %1182 = vmatprep.subr.mxu0 0.0
        %1183 = vmatpush1.msra.mxu0 0.0
        %1184 = vmatprep.subr.mxu0 0.0
        %1185 = vmatpush1.msra.mxu0 0.0
        %1186 = vmatprep.subr.mxu0 0.0
        %1187 = vmatpush1.msra.mxu0 0.0
        %1188 = vmatprep.subr.mxu0 0.0
        %1189 = vmatpush1.msra.mxu0 0.0
        %1190 = vmatprep.subr.mxu0 0.0
        %1191 = vmatpush1.msra.mxu0 0.0
        %1192 = vmatprep.subr.mxu0 0.0
        %1193 = vmatpush1.msra.mxu0 0.0
        %1194 = vmatprep.subr.mxu0 0.0
        %1195 = vmatpush1.msra.mxu0 0.0
        %1196 = vmatprep.subr.mxu0 0.0
        %1197 = vmatpush1.msra.mxu0 0.0
        %1198 = vmatprep.subr.mxu0 0.0
        %1199 = vmatpush1.msra.mxu0 0.0
        %1200 = vmatprep.subr.mxu0 0.0
        %1201 = vmatpush1.msra.mxu0 0.0
        %1202 = vmatprep.subr.mxu0 0.0
        %1203 = vmatpush1.msra.mxu0 0.0
        %1204 = vmatprep.subr.mxu0 0.0
        %1205 = vmatpush1.msra.mxu0 0.0
        %1206 = vmatprep.subr.mxu0 0.0
        %1207 = vmatpush1.msra.mxu0 0.0
        %1208 = vmatprep.subr.mxu0 0.0
        %1209 = vmatpush1.msra.mxu0 0.0
        %1210 = vmatprep.subr.mxu0 0.0
        %1211 = vmatpush1.msra.mxu0 0.0
        %1212 = vmatprep.subr.mxu0 0.0
        %1213 = vmatpush1.msra.mxu0 0.0
        %1214 = vmatprep.subr.mxu0 0.0
        %1215 = vmatpush1.msra.mxu0 0.0
        %1216 = vmatprep.subr.mxu0 0.0
        %1217 = vmatpush1.msra.mxu0 0.0
        %1218 = vmatprep.subr.mxu0 0.0
        %1219 = vmatpush1.msra.mxu0 0.0
        %1220 = vmatprep.subr.mxu0 0.0
        %1221 = vmatpush1.msra.mxu0 0.0
        %1222 = vmatprep.subr.mxu0 0.0
        %1223 = vmatpush1.msra.mxu0 0.0
        %1224 = vmatprep.subr.mxu0 0.0
        %1225 = vmatpush1.msra.mxu0 0.0
        %1226 = vmatprep.subr.mxu0 0.0
        %1227 = vmatpush1.msra.mxu0 0.0
        %1228 = vmatprep.subr.mxu0 0.0
        %1229 = vmatpush1.msra.mxu0 0.0
        %1230 = vmatprep.subr.mxu0 0.0
        %1231 = vmatpush1.msra.mxu0 0.0
        %1232 = vmatprep.subr.mxu0 0.0
        %1233 = vmatpush1.msra.mxu0 0.0
        %1234 = vmatprep.subr.mxu0 0.0
        %1235 = vmatpush1.msra.mxu0 0.0
        %1236 = vmatprep.subr.mxu0 0.0
        %1237 = vmatpush1.msra.mxu0 0.0
        %1238 = vmatprep.subr.mxu0 0.0
        %1239 = vmatpush1.msra.mxu0 0.0
        %1240 = vmatprep.mubr.f32.mxu0 0.0
        %1241 = vmatmul.mubr.f32.gmra.mrb[0].mxu0 %v1171
        %v1242 = vpop.f32.mrb[0].mxu0
        %v1243 = vadd.f32 0.0, %v1242
        %v1244 = vpop.f32.mrb[0].mxu0
        %1245 = vmatprep.mubr.f32.mxu0 0.0
        %1246 = vmatmul.mubr.f32.gmra.mrb[0].mxu0 %v1174
        %v1247 = vpop.f32.mrb[0].mxu0
        %v1248 = vadd.f32 0.0, %v1247
        %v1249 = vpop.f32.mrb[0].mxu0
        %1250 = vdwg.mxu0
        %v1251 = vmul.f32 %v1082, %v1243
        %v1252 = vmul.f32 %v1084, %v1248
        %v1254 = vsel %vm529, %v519, 0
        %v1257 = vsel %vm529, %v520, 0
        %v1260 = vsel %vm529, %v521, 0
        %v1263 = vsel %vm529, %v522, 0
        %v1266 = vsel %vm529, %v523, 0
        %v1269 = vsel %vm529, %v524, 0
        %v1272 = vsel %vm529, %v525, 0
        %v1275 = vsel %vm529, %v526, 0
        %1277 = vmatprep.subr.mxu0 0.0
        %1278 = vmatpush1.msra.mxu0 %v791
        %1279 = vmatprep.subr.mxu0 0.0
        %1280 = vmatpush1.msra.mxu0 %v796
        %1281 = vmatprep.subr.mxu0 0.0
        %1282 = vmatpush1.msra.mxu0 0.0
        %1283 = vmatprep.subr.mxu0 0.0
        %1284 = vmatpush1.msra.mxu0 0.0
        %1285 = vmatprep.subr.mxu0 0.0
        %1286 = vmatpush1.msra.mxu0 0.0
        %1287 = vmatprep.subr.mxu0 0.0
        %1288 = vmatpush1.msra.mxu0 0.0
        %1289 = vmatprep.subr.mxu0 0.0
        %1290 = vmatpush1.msra.mxu0 0.0
        %1291 = vmatprep.subr.mxu0 0.0
        %1292 = vmatpush1.msra.mxu0 0.0
        %1293 = vmatprep.subr.mxu0 0.0
        %1294 = vmatpush1.msra.mxu0 0.0
        %1295 = vmatprep.subr.mxu0 0.0
        %1296 = vmatpush1.msra.mxu0 0.0
        %1297 = vmatprep.subr.mxu0 0.0
        %1298 = vmatpush1.msra.mxu0 0.0
        %1299 = vmatprep.subr.mxu0 0.0
        %1300 = vmatpush1.msra.mxu0 0.0
        %1301 = vmatprep.subr.mxu0 0.0
        %1302 = vmatpush1.msra.mxu0 0.0
        %1303 = vmatprep.subr.mxu0 0.0
        %1304 = vmatpush1.msra.mxu0 0.0
        %1305 = vmatprep.subr.mxu0 0.0
        %1306 = vmatpush1.msra.mxu0 0.0
        %1307 = vmatprep.subr.mxu0 0.0
        %1308 = vmatpush1.msra.mxu0 0.0
        %1309 = vmatprep.subr.mxu0 0.0
        %1310 = vmatpush1.msra.mxu0 0.0
        %1311 = vmatprep.subr.mxu0 0.0
        %1312 = vmatpush1.msra.mxu0 0.0
        %1313 = vmatprep.subr.mxu0 0.0
        %1314 = vmatpush1.msra.mxu0 0.0
        %1315 = vmatprep.subr.mxu0 0.0
        %1316 = vmatpush1.msra.mxu0 0.0
        %1317 = vmatprep.subr.mxu0 0.0
        %1318 = vmatpush1.msra.mxu0 0.0
        %1319 = vmatprep.subr.mxu0 0.0
        %1320 = vmatpush1.msra.mxu0 0.0
        %1321 = vmatprep.subr.mxu0 0.0
        %1322 = vmatpush1.msra.mxu0 0.0
        %1323 = vmatprep.subr.mxu0 0.0
        %1324 = vmatpush1.msra.mxu0 0.0
        %1325 = vmatprep.subr.mxu0 0.0
        %1326 = vmatpush1.msra.mxu0 0.0
        %1327 = vmatprep.subr.mxu0 0.0
        %1328 = vmatpush1.msra.mxu0 0.0
        %1329 = vmatprep.subr.mxu0 0.0
        %1330 = vmatpush1.msra.mxu0 0.0
        %1331 = vmatprep.subr.mxu0 0.0
        %1332 = vmatpush1.msra.mxu0 0.0
        %1333 = vmatprep.subr.mxu0 0.0
        %1334 = vmatpush1.msra.mxu0 0.0
        %1335 = vmatprep.subr.mxu0 0.0
        %1336 = vmatpush1.msra.mxu0 0.0
        %1337 = vmatprep.subr.mxu0 0.0
        %1338 = vmatpush1.msra.mxu0 0.0
        %1339 = vmatprep.subr.mxu0 0.0
        %1340 = vmatpush1.msra.mxu0 0.0
        %1341 = vmatprep.mubr.f32.mxu0 0.0
        %1342 = vmatmul.mubr.f32.gmra.mrb[0].mxu0 %v1254
        %v1343 = vpop.f32.mrb[0].mxu0
        %v1344 = vadd.f32 0.0, %v1343
        %v1345 = vpop.f32.mrb[0].mxu0
        %1346 = vmatprep.mubr.f32.mxu0 0.0
        %1347 = vmatmul.mubr.f32.gmra.mrb[0].mxu0 %v1257
        %v1348 = vpop.f32.mrb[0].mxu0
        %v1349 = vadd.f32 0.0, %v1348
        %v1350 = vpop.f32.mrb[0].mxu0
        %1351 = vmatprep.mubr.f32.mxu0 0.0
        %1352 = vmatmul.mubr.f32.gmra.mrb[0].mxu0 %v1260
        %v1353 = vpop.f32.mrb[0].mxu0
        %v1354 = vadd.f32 0.0, %v1353
        %v1355 = vpop.f32.mrb[0].mxu0
        %1356 = vmatprep.mubr.f32.mxu0 0.0
        %1357 = vmatmul.mubr.f32.gmra.mrb[0].mxu0 %v1263
        %v1358 = vpop.f32.mrb[0].mxu0
        %v1359 = vadd.f32 0.0, %v1358
        %v1360 = vpop.f32.mrb[0].mxu0
        %1361 = vmatprep.mubr.f32.mxu0 0.0
        %1362 = vmatmul.mubr.f32.gmra.mrb[0].mxu0 %v1266
        %v1363 = vpop.f32.mrb[0].mxu0
        %v1364 = vadd.f32 0.0, %v1363
        %v1365 = vpop.f32.mrb[0].mxu0
        %1366 = vmatprep.mubr.f32.mxu0 0.0
        %1367 = vmatmul.mubr.f32.gmra.mrb[0].mxu0 %v1269
        %v1368 = vpop.f32.mrb[0].mxu0
        %v1369 = vadd.f32 0.0, %v1368
        %v1370 = vpop.f32.mrb[0].mxu0
        %1371 = vmatprep.mubr.f32.mxu0 0.0
        %1372 = vmatmul.mubr.f32.gmra.mrb[0].mxu0 %v1272
        %v1373 = vpop.f32.mrb[0].mxu0
        %v1374 = vadd.f32 0.0, %v1373
        %v1375 = vpop.f32.mrb[0].mxu0
        %1376 = vmatprep.mubr.f32.mxu0 0.0
        %1377 = vmatmul.mubr.f32.gmra.mrb[0].mxu0 %v1275
        %v1378 = vpop.f32.mrb[0].mxu0
        %v1379 = vadd.f32 0.0, %v1378
        %v1380 = vpop.f32.mrb[0].mxu0
        %1381 = vdwg.mxu0
        %s1382 = smul.u32 %s704, 64
        %s1383 = scalar_lea.vmem %s6, %s1382
        %v1384 = vld [vmem:[%s1383] sm:$0xff]
        %v1385 = vld [vmem:[%s1383 + $0x8] sm:$0xff]
        %v1386 = vld [vmem:[%s1383 + $0x10] sm:$0xff]
        %v1387 = vld [vmem:[%s1383 + $0x18] sm:$0xff]
        %v1388 = vld [vmem:[%s1383 + $0x20] sm:$0xff]
        %v1389 = vld [vmem:[%s1383 + $0x28] sm:$0xff]
        %v1390 = vld [vmem:[%s1383 + $0x30] sm:$0xff]
        %v1391 = vld [vmem:[%s1383 + $0x38] sm:$0xff]
        %v1392 = vmul.f32 %v1344, %v1384
        %v1393 = vmul.f32 %v1349, %v1385
        %v1394 = vmul.f32 %v1354, %v1386
        %v1395 = vmul.f32 %v1359, %v1387
        %v1396 = vmul.f32 %v1364, %v1388
        %v1397 = vmul.f32 %v1369, %v1389
        %v1398 = vmul.f32 %v1374, %v1390
        %v1399 = vmul.f32 %v1379, %v1391
        %v1401 = vsel %vm972, %v1251, 0
        %v1404 = vsel %vm972, %v1252, 0
        %1406 = vmatprep.subr.mxu0 0.0
        %1407 = vmatpush1.msra.mxu0 %v1392
        %1408 = vmatprep.subr.mxu0 0.0
        %1409 = vmatpush1.msra.mxu0 %v1393
        %1410 = vmatprep.subr.mxu0 0.0
        %1411 = vmatpush1.msra.mxu0 %v1394
        %1412 = vmatprep.subr.mxu0 0.0
        %1413 = vmatpush1.msra.mxu0 %v1395
        %1414 = vmatprep.subr.mxu0 0.0
        %1415 = vmatpush1.msra.mxu0 %v1396
        %1416 = vmatprep.subr.mxu0 0.0
        %1417 = vmatpush1.msra.mxu0 %v1397
        %1418 = vmatprep.subr.mxu0 0.0
        %1419 = vmatpush1.msra.mxu0 %v1398
        %1420 = vmatprep.subr.mxu0 0.0
        %1421 = vmatpush1.msra.mxu0 %v1399
        %1422 = vmatprep.subr.mxu0 0.0
        %1423 = vmatpush1.msra.mxu0 0.0
        %1424 = vmatprep.subr.mxu0 0.0
        %1425 = vmatpush1.msra.mxu0 0.0
        %1426 = vmatprep.subr.mxu0 0.0
        %1427 = vmatpush1.msra.mxu0 0.0
        %1428 = vmatprep.subr.mxu0 0.0
        %1429 = vmatpush1.msra.mxu0 0.0
        %1430 = vmatprep.subr.mxu0 0.0
        %1431 = vmatpush1.msra.mxu0 0.0
        %1432 = vmatprep.subr.mxu0 0.0
        %1433 = vmatpush1.msra.mxu0 0.0
        %1434 = vmatprep.subr.mxu0 0.0
        %1435 = vmatpush1.msra.mxu0 0.0
        %1436 = vmatprep.subr.mxu0 0.0
        %1437 = vmatpush1.msra.mxu0 0.0
        %1438 = vmatprep.subr.mxu0 0.0
        %1439 = vmatpush1.msra.mxu0 0.0
        %1440 = vmatprep.subr.mxu0 0.0
        %1441 = vmatpush1.msra.mxu0 0.0
        %1442 = vmatprep.subr.mxu0 0.0
        %1443 = vmatpush1.msra.mxu0 0.0
        %1444 = vmatprep.subr.mxu0 0.0
        %1445 = vmatpush1.msra.mxu0 0.0
        %1446 = vmatprep.subr.mxu0 0.0
        %1447 = vmatpush1.msra.mxu0 0.0
        %1448 = vmatprep.subr.mxu0 0.0
        %1449 = vmatpush1.msra.mxu0 0.0
        %1450 = vmatprep.subr.mxu0 0.0
        %1451 = vmatpush1.msra.mxu0 0.0
        %1452 = vmatprep.subr.mxu0 0.0
        %1453 = vmatpush1.msra.mxu0 0.0
        %1454 = vmatprep.subr.mxu0 0.0
        %1455 = vmatpush1.msra.mxu0 0.0
        %1456 = vmatprep.subr.mxu0 0.0
        %1457 = vmatpush1.msra.mxu0 0.0
        %1458 = vmatprep.subr.mxu0 0.0
        %1459 = vmatpush1.msra.mxu0 0.0
        %1460 = vmatprep.subr.mxu0 0.0
        %1461 = vmatpush1.msra.mxu0 0.0
        %1462 = vmatprep.subr.mxu0 0.0
        %1463 = vmatpush1.msra.mxu0 0.0
        %1464 = vmatprep.subr.mxu0 0.0
        %1465 = vmatpush1.msra.mxu0 0.0
        %1466 = vmatprep.subr.mxu0 0.0
        %1467 = vmatpush1.msra.mxu0 0.0
        %1468 = vmatprep.subr.mxu0 0.0
        %1469 = vmatpush1.msra.mxu0 0.0
        %1470 = vmatprep.mubr.f32.mxu0 0.0
        %1471 = vmatmul.mubr.f32.gmra.mrb[0].mxu0 %v1401
        %v1472 = vpop.f32.mrb[0].mxu0
        %v1473 = vadd.f32 0.0, %v1472
        %v1474 = vpop.f32.mrb[0].mxu0
        %1475 = vmatprep.mubr.f32.mxu0 0.0
        %1476 = vmatmul.mubr.f32.gmra.mrb[0].mxu0 %v1404
        %v1477 = vpop.f32.mrb[0].mxu0
        %v1478 = vadd.f32 0.0, %v1477
        %v1479 = vpop.f32.mrb[0].mxu0
        %1480 = vdwg.mxu0
        %1482 = vset.pattern.permute.xlu0 0
        %1483 = vperm.xlu0 %1482, %v506
        %v1484 = vpop.permute.xlu0 %1483
        %1487 = vset.pattern.permute.xlu0 0
        %1488 = vperm.xlu0 %1487, %v507
        %v1489 = vpop.permute.xlu0 %1488
        %v1491 = vmul.f32 %v1473, %v1484
        %v1492 = vmul.f32 %v1478, %v1489
        %s1493 = scalar_lea.vmem %s7, %s704
        %v1494 = vld [vmem:[%s1493] sm:$0x1]
        %v1496 = vlaneseq
        %v1497 = vshrl.u32 %v1496, 7
        %v1498 = vsub.s32 0, %v1497
        %v1499 = vrot.slane %v1494, %v1498
        %v1501 = vadd.f32 %v1491, %v1499
        %v1502 = vadd.f32 %v1492, %v1499
        %v1503 = vmin.f32 %v1501, 0.0
        %v1504 = vmin.f32 %v1502, 0.0
        %vm1505 = vcmp.gt.f32.partialorder %v1501, 0.0
        %vm1506 = vcmp.gt.f32.partialorder %v1502, 0.0
        %v1507 = vmul.f32 %v1503, 1.442695
        %v1508 = vpow.pop %v1507
        %v1509 = vmul.f32 %v1504, 1.442695
        %v1510 = vpow.pop %v1509
        %v1511 = vsub.f32 %v1508, 1.0
        %v1512 = vsub.f32 %v1510, 1.0
        %v1513 = vsel %vm1505, %v1501, %v1511
        %v1514 = vsel %vm1506, %v1502, %v1512
        %v1515 = vadd.f32 %v1513, %v709
        %v1516 = vadd.f32 %v1514, %v710
      $region81: #{gat_net_forward.1} parent=75 // loop_footer
        %s708 = sadd.s32 1, %s704
      $region82: #{gat_net_forward.1} parent=75 // loop_footer_branch
        %703 = sbr.rel target = $region78
      $region83: #{gat_net_forward.1} parent=75 // loop_exit
        _
      %vm1517 = vcmask 261120
      %v1518 = vsel %vm1517, %v709, 0.0
      %v1519 = vsel %vm1517, %v710, 0.0
      %v1520 = vadd.f32 %v1518, %v1519
      %v1521 = vrot.slane %v1520, 4
      %v1522 = vadd.f32 %v1520, %v1521
      %v1523 = vrot.slane %v1522, 2
      %v1524 = vadd.f32 %v1522, %v1523
      %v1525 = vrot.slane %v1524, 1
      %v1526 = vadd.f32 %v1524, %v1525
      %v1527 = vld [vmem:[%s12] sm:$0xff]
      %v1528 = vld [vmem:[%s12 + $0x8] sm:$0xff]
      %v1529 = vld [vmem:[%s12 + $0x10] sm:$0xff]
      %v1530 = vld [vmem:[%s12 + $0x18] sm:$0xff]
      %v1531 = vld [vmem:[#allocation2] sm:$0x1]
      %v1533 = vsel %vm1517, %v1526, 0
      %1535 = vmatprep.subr.mxu0 0.0
      %1536 = vmatpush1.msra.mxu0 %v1527
      %1537 = vmatprep.subr.mxu0 0.0
      %1538 = vmatpush1.msra.mxu0 %v1528
      %1539 = vmatprep.subr.mxu0 0.0
      %1540 = vmatpush1.msra.mxu0 %v1529
      %1541 = vmatprep.subr.mxu0 0.0
      %1542 = vmatpush1.msra.mxu0 %v1530
      %1543 = vmatprep.subr.mxu0 0.0
      %1544 = vmatpush1.msra.mxu0 0.0
      %1545 = vmatprep.subr.mxu0 0.0
      %1546 = vmatpush1.msra.mxu0 0.0
      %1547 = vmatprep.subr.mxu0 0.0
      %1548 = vmatpush1.msra.mxu0 0.0
      %1549 = vmatprep.subr.mxu0 0.0
      %1550 = vmatpush1.msra.mxu0 0.0
      %1551 = vmatprep.subr.mxu0 0.0
      %1552 = vmatpush1.msra.mxu0 0.0
      %1553 = vmatprep.subr.mxu0 0.0
      %1554 = vmatpush1.msra.mxu0 0.0
      %1555 = vmatprep.subr.mxu0 0.0
      %1556 = vmatpush1.msra.mxu0 0.0
      %1557 = vmatprep.subr.mxu0 0.0
      %1558 = vmatpush1.msra.mxu0 0.0
      %1559 = vmatprep.subr.mxu0 0.0
      %1560 = vmatpush1.msra.mxu0 0.0
      %1561 = vmatprep.subr.mxu0 0.0
      %1562 = vmatpush1.msra.mxu0 0.0
      %1563 = vmatprep.subr.mxu0 0.0
      %1564 = vmatpush1.msra.mxu0 0.0
      %1565 = vmatprep.subr.mxu0 0.0
      %1566 = vmatpush1.msra.mxu0 0.0
      %1567 = vmatprep.subr.mxu0 0.0
      %1568 = vmatpush1.msra.mxu0 0.0
      %1569 = vmatprep.subr.mxu0 0.0
      %1570 = vmatpush1.msra.mxu0 0.0
      %1571 = vmatprep.subr.mxu0 0.0
      %1572 = vmatpush1.msra.mxu0 0.0
      %1573 = vmatprep.subr.mxu0 0.0
      %1574 = vmatpush1.msra.mxu0 0.0
      %1575 = vmatprep.subr.mxu0 0.0
      %1576 = vmatpush1.msra.mxu0 0.0
      %1577 = vmatprep.subr.mxu0 0.0
      %1578 = vmatpush1.msra.mxu0 0.0
      %1579 = vmatprep.subr.mxu0 0.0
      %1580 = vmatpush1.msra.mxu0 0.0
      %1581 = vmatprep.subr.mxu0 0.0
      %1582 = vmatpush1.msra.mxu0 0.0
      %1583 = vmatprep.subr.mxu0 0.0
      %1584 = vmatpush1.msra.mxu0 0.0
      %1585 = vmatprep.subr.mxu0 0.0
      %1586 = vmatpush1.msra.mxu0 0.0
      %1587 = vmatprep.subr.mxu0 0.0
      %1588 = vmatpush1.msra.mxu0 0.0
      %1589 = vmatprep.subr.mxu0 0.0
      %1590 = vmatpush1.msra.mxu0 0.0
      %1591 = vmatprep.subr.mxu0 0.0
      %1592 = vmatpush1.msra.mxu0 0.0
      %1593 = vmatprep.subr.mxu0 0.0
      %1594 = vmatpush1.msra.mxu0 0.0
      %1595 = vmatprep.subr.mxu0 0.0
      %1596 = vmatpush1.msra.mxu0 0.0
      %1597 = vmatprep.subr.mxu0 0.0
      %1598 = vmatpush1.msra.mxu0 0.0
      %1599 = vmatprep.mubr.f32.mxu0 0.0
      %1600 = vmatmul.mubr.f32.gmra.mrb[0].mxu0 %v1533
      %v1601 = vpop.f32.mrb[0].mxu0
      %v1602 = vadd.f32 %v1531, %v1601
      %v1603 = vpop.f32.mrb[0].mxu0
      %1604 = vdwg.mxu0
      %vm1605 = vcmask 0
      %1606 = vst.msk [vmem:[%s505] sm:$0x1] %vm1605, %v1602
      %p1607 = scmp.lt.s32.totalorder %s27, 3
      %s1608 = scalar_select %p1607, %s27, 3
      %s1609 = scalar_lea.vmem %s14, %s1608
      // Predicated region
      $region84: #{gat_net_forward.1} parent=75 // pred_check
        %p1610 = pneg %p354
      $region85: #{gat_net_forward.1} parent=75 // pred_check_branch
        %1612 = sbr.rel (%p1610) target = $region87
      $region86: #{gat_net_forward.1} parent=75 // pred_region
        _
      $region87: #{gat_net_forward.1} parent=75 // pred_fallthru
        _
    $region76: #{gat_net_forward.1} parent=5 // pred_fallthru
      _
    %p1613 = scmp.le.s32.totalorder 2, %s22
    // Predicated region
    $region88: #{gat_net_forward.1} parent=5 // pred_check
      %p1614 = pneg %p1613
    $region89: #{gat_net_forward.1} parent=5 // pred_check_branch
      %1616 = sbr.rel (%p1614) target = $region91
    $region90: #{gat_net_forward.1} parent=5 // pred_region
      %s1617 = ssub.s32 %s22, 2
      // Predicated region
      $region92: #{gat_net_forward.1} parent=90 // pred_check
        %p1618 = pneg %p360
      $region93: #{gat_net_forward.1} parent=90 // pred_check_branch
        %1620 = sbr.rel (%p1618) target = $region95
      $region94: #{gat_net_forward.1} parent=90 // pred_region
        %p1621 = scmp.lt.s32.totalorder %s28, 3
        %s1622 = scalar_select %p1621, %s28, 3
        %s1623 = scalar_lea.vmem %s14, %s1622
      $region95: #{gat_net_forward.1} parent=90 // pred_fallthru
        _
    $region91: #{gat_net_forward.1} parent=5 // pred_fallthru
      _
  $region6: #{gat_net_forward.1} parent=0 // loop_footer
    %s26 = sadd.s32 1, %s22
  $region7: #{gat_net_forward.1} parent=0 // loop_footer_branch
    %21 = sbr.rel target = $region3
  $region8: #{gat_net_forward.1} parent=0 // loop_exit
    _

</llo_original>
